<compile_context>
chip_gen: v5e
topology: v5e:2x2
jax: 0.10.0
libtpu: 0.0.40
codegen_flags: <defaults>
</compile_context>

<pallas_src>
import jax
import jax.numpy as jnp
from jax.experimental import pallas as pl
from jax.experimental.pallas import tpu as pltpu

TOKEN = 3          # GAT token / patch size (kernel == stride)
TOP_K = 7          # adj_index top_k
LEAKY_ALPHA = 0.2  # GraphAttentionLayer LeakyReLU slope


def _elu(v):
  return jnp.where(v > 0.0, v, jnp.exp(jnp.minimum(v, 0.0)) - 1.0)


def _gat_layer(h, adj, w, a_src_row, a_dst_row):
  """One GraphAttentionLayer (returns h_prime; caller applies the activation)."""
  wh = jnp.dot(h, w, preferred_element_type=jnp.float32)                  # [N, F]
  # e[i, j] = leakyrelu( Wh[i]·a_src + Wh[j]·a_dst )
  f1 = jnp.sum(wh * a_src_row, axis=-1, keepdims=True)                    # [N, 1]
  f2 = jax.lax.dot_general(a_dst_row, wh, (((1,), (1,)), ((), ())),
                           preferred_element_type=jnp.float32)            # [1, N]
  e = f1 + f2                                                             # [N, N]
  e = jnp.where(e > 0.0, e, LEAKY_ALPHA * e)                              # LeakyReLU
  e = jnp.where(adj, e, jnp.float32(-9e15))                               # mask non-edges
  e = e - jnp.max(e, axis=-1, keepdims=True)                              # stable softmax
  p = jnp.exp(e)
  p = p / jnp.sum(p, axis=-1, keepdims=True)
  return jnp.dot(p, wh, preferred_element_type=jnp.float32)               # [N, F]


def tpmfb_kernel(patches_ref,
                 wc_ref, bc_ref,
                 w1_ref, a1s_ref, a1d_ref,
                 w2_ref, a2s_ref, a2d_ref,
                 wd_ref, bd_ref,
                 wobd_ref, bo_ref,
                 o_ref):
  patches = patches_ref[0].astype(jnp.float32)                            # [N, 9C]
  n = patches.shape[0]

  # ---- GAT.conv: token-patch conv (k = s = token) as ONE fat-K matmul + ReLU -------
  h = jnp.dot(patches, wc_ref[...], preferred_element_type=jnp.float32) + bc_ref[...]
  h = jnp.maximum(h, 0.0)                                                 # [N, C]

  # ---- adj_index: k LARGEST pairwise L2 distances per row (torch.topk default) -----
  g = jax.lax.dot_general(h, h, (((1,), (1,)), ((), ())),
                          preferred_element_type=jnp.float32)             # [N, N] Gram
  rid = jax.lax.broadcasted_iota(jnp.int32, (n, n), 0)
  cid = jax.lax.broadcasted_iota(jnp.int32, (n, n), 1)
  eye = (rid == cid).astype(jnp.float32)
  sq_row = jnp.sum(g * eye, axis=0, keepdims=True)                        # [1, N] = ||h_j||^2
  # Within row i, ranking by d^2(i,j) = ||h_i||^2 + ||h_j||^2 - 2<h_i,h_j>
  # equals ranking by m(i,j) = ||h_j||^2 - 2<h_i,h_j>  (row-constant term dropped).
  m = sq_row - 2.0 * g                                                    # [N, N]
  rank = jnp.zeros((n, n), jnp.float32)
  for l in range(n):   # N is small & static; rank[i,j] = #{l : d(i,l) > d(i,j)}
    rank = rank + (m[:, l:l + 1] > m).astype(jnp.float32)
  adj = rank < jnp.float32(TOP_K)                                         # bool [N, N]

  # ---- two GraphAttentionLayers (head + out_att), each followed by ELU -------------
  h1 = _elu(_gat_layer(h, adj, w1_ref[...], a1s_ref[...], a1d_ref[...]))
  h2 = _elu(_gat_layer(h1, adj, w2_ref[...], a2s_ref[...], a2d_ref[...]))

  # ---- deconv (k = s = token) back to patch layout, residual + ReLU ------------------
  d = jnp.dot(h2, wd_ref[...], preferred_element_type=jnp.float32) + bd_ref[...]  # [N, 9C]
  gat_out = jnp.maximum(d + patches, 0.0)      # F.relu(interp(deconv(gat)) + x); interp == id

  # TODO(synk): dire_branch (MDB) not supplied -> omitted; fused_out = gat_out.
  fused = gat_out

  # ---- output_layer: 1x1 conv on every pixel via a block-diagonal weight (1 matmul) --
  o = jnp.dot(fused, wobd_ref[...], preferred_element_type=jnp.float32) + bo_ref[...]
  o_ref[0] = o.astype(o_ref.dtype)                                        # lane-dense store


def init_params(key, feat=32, token=3):
  """Random weights, stored directly in the kernel layouts (PyTorch mapping in comments)."""
  t2 = token * token
  ks = jax.random.split(key, 10)
  s = 0.1
  # GAT.conv: PyTorch Conv2d weight [feat, feat, t, t] -> [t*t*feat, feat] with row
  # index (dy*t + dx)*feat + cin  (= w.permute(2, 3, 1, 0).reshape(...)).
  wc = jax.random.normal(ks[0], (t2 * feat, feat), jnp.float32) * s
  bc = jax.random.normal(ks[1], (1, feat), jnp.float32) * s
  # attention head: W [feat, feat]; a [2*feat, 1] split into src/dst rows.
  w1 = jax.random.normal(ks[2], (feat, feat), jnp.float32) * s
  a1 = jax.random.normal(ks[3], (2 * feat, 1), jnp.float32) * s
  a1s, a1d = a1[:feat].T, a1[feat:].T                       # [1, feat] each
  # out_att: W [feat, feat]; a [2*feat, 1].
  w2 = jax.random.normal(ks[4], (feat, feat), jnp.float32) * s
  a2 = jax.random.normal(ks[5], (2 * feat, 1), jnp.float32) * s
  a2s, a2d = a2[:feat].T, a2[feat:].T
  # deconv: PyTorch ConvTranspose2d weight [feat_in, feat_out, t, t] -> [feat, t*t*feat]
  # with column index (dy*t + dx)*feat + cout; bias tiled once per tap.
  wd = jax.random.normal(ks[6], (feat, t2 * feat), jnp.float32) * s
  bd = jax.random.normal(ks[7], (1, feat), jnp.float32) * s
  bd_t = jnp.tile(bd, (1, t2))
  # output_layer 1x1 conv: PyTorch [feat_out, feat_in, 1, 1] -> [feat_in, feat_out];
  # applied to all 9 taps at once via a block-diagonal [9*feat, 9*feat] weight.
  wo = jax.random.normal(ks[8], (feat, feat), jnp.float32) * s
  wo_bd = jnp.kron(jnp.eye(t2, dtype=jnp.float32), wo)
  bo = jax.random.normal(ks[9], (1, feat), jnp.float32) * s
  bo_t = jnp.tile(bo, (1, t2))
  return (wc, bc, w1, a1s, a1d, w2, a2s, a2d, wd, bd_t, wo_bd, bo_t)


@jax.jit
def tpmfb_forward(x, params):
  """TPMFB forward.  x: [B, C, H, W] (PyTorch NCHW).  Returns [B, C, H, W]."""
  B, C, H, W = x.shape
  t = TOKEN
  assert H % t == 0 and W % t == 0, "H, W must be divisible by token (interp == identity)"
  col, row = H // t, W // t
  n = col * row
  t2 = t * t

  # im2col into token patches (pure layout, done in XLA):
  #   patches[b, p*row + q, (dy*t + dx)*C + c] = x[b, c, t*p + dy, t*q + dx]
  xp = x.reshape(B, C, col, t, row, t)
  xp = jnp.transpose(xp, (0, 2, 4, 3, 5, 1))                 # [B, col, row, t, t, C]
  patches = xp.reshape(B, n, t2 * C)

  def full_spec(a):
    nd = a.ndim
    return pl.BlockSpec(a.shape, lambda b, nd=nd: (0,) * nd)

  in_specs = [pl.BlockSpec((1, n, t2 * C), lambda b: (b, 0, 0))]
  in_specs += [full_spec(w) for w in params]
  out_spec = pl.BlockSpec((1, n, t2 * C), lambda b: (b, 0, 0))

  out = pl.pallas_call(
      tpmfb_kernel,
      out_shape=jax.ShapeDtypeStruct((B, n, t2 * C), jnp.float32),
      grid=(B,),
      in_specs=in_specs,
      out_specs=out_spec,
      compiler_params=pltpu.CompilerParams(dimension_semantics=("parallel",)),
  )(patches, *params)

  # col2im back to NCHW: out[b, n, (dy*t + dx)*C + co] -> y[b, co, t*p + dy, t*q + dx]
  y = out.reshape(B, col, row, t, t, C)
  y = jnp.transpose(y, (0, 5, 1, 3, 2, 4))                   # [B, C, col, t, row, t]
  return y.reshape(B, C, H, W)


if __name__ == "__main__":
  # in_feature == out_feature (required by the GAT residual), token=3 -> 4x4 = 16 nodes,
  # top_k = 7 <= 16.
  B, C, H, W = 2, 32, 12, 12
  key = jax.random.PRNGKey(0)
  kx, kp = jax.random.split(key)
  x = jax.random.normal(kx, (B, C, H, W), jnp.float32)       # PyTorch layout [B, C, H, W]
  params = init_params(kp, feat=C, token=TOKEN)

  out = tpmfb_forward(x, params)
  out = jax.block_until_ready(out)

  assert out.shape == (B, C, H, W), out.shape
  assert bool(jnp.all(jnp.isfinite(out)))
  print("KERNEL_OK")
</pallas_src>

<mosaic_0001>
module attributes {stable_mosaic.version = 11 : i64} {
  func.func @tpmfb_kernel(%arg0: i32, %arg1: memref<1x16x288xf32, #tpu.memory_space<vmem>>, %arg2: memref<288x32xf32, #tpu.memory_space<vmem>>, %arg3: memref<1x32xf32, #tpu.memory_space<vmem>>, %arg4: memref<32x32xf32, #tpu.memory_space<vmem>>, %arg5: memref<1x32xf32, #tpu.memory_space<vmem>>, %arg6: memref<1x32xf32, #tpu.memory_space<vmem>>, %arg7: memref<32x32xf32, #tpu.memory_space<vmem>>, %arg8: memref<1x32xf32, #tpu.memory_space<vmem>>, %arg9: memref<1x32xf32, #tpu.memory_space<vmem>>, %arg10: memref<32x288xf32, #tpu.memory_space<vmem>>, %arg11: memref<1x288xf32, #tpu.memory_space<vmem>>, %arg12: memref<288x288xf32, #tpu.memory_space<vmem>>, %arg13: memref<1x288xf32, #tpu.memory_space<vmem>>, %arg14: memref<1x16x288xf32, #tpu.memory_space<vmem>>) attributes {dimension_semantics = [#tpu.dimension_semantics<parallel>], iteration_bounds = array<i64: 2>, scalar_prefetch = 0 : i64, scratch_operands = 0 : i64, tpu.core_type = #tpu.core_type<tc>, window_params = [{transform_indices = @transform_0, window_bounds = array<i64: 1, 16, 288>}, {pipeline_mode = #tpu.pipeline_mode<synchronous>, transform_indices = @transform_1, window_bounds = array<i64: 288, 32>}, {pipeline_mode = #tpu.pipeline_mode<synchronous>, transform_indices = @transform_2, window_bounds = array<i64: 1, 32>}, {pipeline_mode = #tpu.pipeline_mode<synchronous>, transform_indices = @transform_3, window_bounds = array<i64: 32, 32>}, {pipeline_mode = #tpu.pipeline_mode<synchronous>, transform_indices = @transform_4, window_bounds = array<i64: 1, 32>}, {pipeline_mode = #tpu.pipeline_mode<synchronous>, transform_indices = @transform_5, window_bounds = array<i64: 1, 32>}, {pipeline_mode = #tpu.pipeline_mode<synchronous>, transform_indices = @transform_6, window_bounds = array<i64: 32, 32>}, {pipeline_mode = #tpu.pipeline_mode<synchronous>, transform_indices = @transform_7, window_bounds = array<i64: 1, 32>}, {pipeline_mode = #tpu.pipeline_mode<synchronous>, transform_indices = @transform_8, window_bounds = array<i64: 1, 32>}, {pipeline_mode = #tpu.pipeline_mode<synchronous>, transform_indices = @transform_9, window_bounds = array<i64: 32, 288>}, {pipeline_mode = #tpu.pipeline_mode<synchronous>, transform_indices = @transform_10, window_bounds = array<i64: 1, 288>}, {pipeline_mode = #tpu.pipeline_mode<synchronous>, transform_indices = @transform_11, window_bounds = array<i64: 288, 288>}, {pipeline_mode = #tpu.pipeline_mode<synchronous>, transform_indices = @transform_12, window_bounds = array<i64: 1, 288>}, {transform_indices = @transform_13, window_bounds = array<i64: 1, 16, 288>}]} {
    %c0 = arith.constant 0 : index
    %c0_0 = arith.constant 0 : index
    %c0_1 = arith.constant 0 : index
    %0 = vector.load %arg1[%c0, %c0_0, %c0_1] : memref<1x16x288xf32, #tpu.memory_space<vmem>>, vector<1x16x288xf32>
    %1 = vector.shape_cast %0 : vector<1x16x288xf32> to vector<16x288xf32>
    %c0_2 = arith.constant 0 : index
    %c0_3 = arith.constant 0 : index
    %2 = vector.load %arg2[%c0_2, %c0_3] : memref<288x32xf32, #tpu.memory_space<vmem>>, vector<288x32xf32>
    %cst = arith.constant dense<0.000000e+00> : vector<16x32xf32>
    %3 = tpu.matmul %1, %2, %cst {dimension_numbers = #tpu.dot_dimension_numbers<[1], [0], [0], [1], [0, 0, 1, 1], [], []>} : vector<16x288xf32>, vector<288x32xf32>, vector<16x32xf32> -> vector<16x32xf32>
    %c0_4 = arith.constant 0 : index
    %c0_5 = arith.constant 0 : index
    %4 = vector.load %arg3[%c0_4, %c0_5] : memref<1x32xf32, #tpu.memory_space<vmem>>, vector<1x32xf32>
    %5 = vector.broadcast %4 : vector<1x32xf32> to vector<16x32xf32>
    %6 = arith.addf %3, %5 : vector<16x32xf32>
    %cst_6 = arith.constant 0.000000e+00 : f32
    %7 = vector.broadcast %cst_6 : f32 to vector<16x32xf32>
    %8 = arith.maximumf %6, %7 : vector<16x32xf32>
    %cst_7 = arith.constant dense<0.000000e+00> : vector<16x16xf32>
    %9 = tpu.matmul %8, %8, %cst_7 {dimension_numbers = #tpu.dot_dimension_numbers<[1], [1], [0], [0], [0, 0, 1, 0], [], []>} : vector<16x32xf32>, vector<16x32xf32>, vector<16x16xf32> -> vector<16x16xf32>
    %10 = tpu.iota {dimensions = array<i32: 0>} : vector<16x16xi32>
    %11 = tpu.iota {dimensions = array<i32: 1>} : vector<16x16xi32>
    %12 = arith.cmpi eq, %10, %11 : vector<16x16xi32>
    %13 = arith.extui %12 : vector<16x16xi1> to vector<16x16xi32>
    %14 = arith.sitofp %13 : vector<16x16xi32> to vector<16x16xf32>
    %15 = arith.mulf %9, %14 : vector<16x16xf32>
    %cst_8 = arith.constant dense<0.000000e+00> : vector<16xf32>
    %16 = vector.multi_reduction <add>, %15, %cst_8 [0] : vector<16x16xf32> to vector<16xf32>
    %17 = vector.shape_cast %16 : vector<16xf32> to vector<1x16xf32>
    %cst_9 = arith.constant 2.000000e+00 : f32
    %18 = vector.broadcast %cst_9 : f32 to vector<16x16xf32>
    %19 = arith.mulf %18, %9 : vector<16x16xf32>
    %20 = vector.broadcast %17 : vector<1x16xf32> to vector<16x16xf32>
    %21 = arith.subf %20, %19 : vector<16x16xf32>
    %cst_10 = arith.constant 0.000000e+00 : f32
    %22 = vector.broadcast %cst_10 : f32 to vector<16x16xf32>
    %23 = vector.extract_strided_slice %21 {offsets = [0, 0], sizes = [16, 1], strides = [1, 1]} : vector<16x16xf32> to vector<16x1xf32>
    %24 = vector.broadcast %23 : vector<16x1xf32> to vector<16x16xf32>
    %25 = arith.cmpf ogt, %24, %21 : vector<16x16xf32>
    %26 = arith.extui %25 : vector<16x16xi1> to vector<16x16xi32>
    %27 = arith.sitofp %26 : vector<16x16xi32> to vector<16x16xf32>
    %28 = arith.addf %22, %27 : vector<16x16xf32>
    %29 = vector.extract_strided_slice %21 {offsets = [0, 1], sizes = [16, 1], strides = [1, 1]} : vector<16x16xf32> to vector<16x1xf32>
    %30 = vector.broadcast %29 : vector<16x1xf32> to vector<16x16xf32>
    %31 = arith.cmpf ogt, %30, %21 : vector<16x16xf32>
    %32 = arith.extui %31 : vector<16x16xi1> to vector<16x16xi32>
    %33 = arith.sitofp %32 : vector<16x16xi32> to vector<16x16xf32>
    %34 = arith.addf %28, %33 : vector<16x16xf32>
    %35 = vector.extract_strided_slice %21 {offsets = [0, 2], sizes = [16, 1], strides = [1, 1]} : vector<16x16xf32> to vector<16x1xf32>
    %36 = vector.broadcast %35 : vector<16x1xf32> to vector<16x16xf32>
    %37 = arith.cmpf ogt, %36, %21 : vector<16x16xf32>
    %38 = arith.extui %37 : vector<16x16xi1> to vector<16x16xi32>
    %39 = arith.sitofp %38 : vector<16x16xi32> to vector<16x16xf32>
    %40 = arith.addf %34, %39 : vector<16x16xf32>
    %41 = vector.extract_strided_slice %21 {offsets = [0, 3], sizes = [16, 1], strides = [1, 1]} : vector<16x16xf32> to vector<16x1xf32>
    %42 = vector.broadcast %41 : vector<16x1xf32> to vector<16x16xf32>
    %43 = arith.cmpf ogt, %42, %21 : vector<16x16xf32>
    %44 = arith.extui %43 : vector<16x16xi1> to vector<16x16xi32>
    %45 = arith.sitofp %44 : vector<16x16xi32> to vector<16x16xf32>
    %46 = arith.addf %40, %45 : vector<16x16xf32>
    %47 = vector.extract_strided_slice %21 {offsets = [0, 4], sizes = [16, 1], strides = [1, 1]} : vector<16x16xf32> to vector<16x1xf32>
    %48 = vector.broadcast %47 : vector<16x1xf32> to vector<16x16xf32>
    %49 = arith.cmpf ogt, %48, %21 : vector<16x16xf32>
    %50 = arith.extui %49 : vector<16x16xi1> to vector<16x16xi32>
    %51 = arith.sitofp %50 : vector<16x16xi32> to vector<16x16xf32>
    %52 = arith.addf %46, %51 : vector<16x16xf32>
    %53 = vector.extract_strided_slice %21 {offsets = [0, 5], sizes = [16, 1], strides = [1, 1]} : vector<16x16xf32> to vector<16x1xf32>
    %54 = vector.broadcast %53 : vector<16x1xf32> to vector<16x16xf32>
    %55 = arith.cmpf ogt, %54, %21 : vector<16x16xf32>
    %56 = arith.extui %55 : vector<16x16xi1> to vector<16x16xi32>
    %57 = arith.sitofp %56 : vector<16x16xi32> to vector<16x16xf32>
    %58 = arith.addf %52, %57 : vector<16x16xf32>
    %59 = vector.extract_strided_slice %21 {offsets = [0, 6], sizes = [16, 1], strides = [1, 1]} : vector<16x16xf32> to vector<16x1xf32>
    %60 = vector.broadcast %59 : vector<16x1xf32> to vector<16x16xf32>
    %61 = arith.cmpf ogt, %60, %21 : vector<16x16xf32>
    %62 = arith.extui %61 : vector<16x16xi1> to vector<16x16xi32>
    %63 = arith.sitofp %62 : vector<16x16xi32> to vector<16x16xf32>
    %64 = arith.addf %58, %63 : vector<16x16xf32>
    %65 = vector.extract_strided_slice %21 {offsets = [0, 7], sizes = [16, 1], strides = [1, 1]} : vector<16x16xf32> to vector<16x1xf32>
    %66 = vector.broadcast %65 : vector<16x1xf32> to vector<16x16xf32>
    %67 = arith.cmpf ogt, %66, %21 : vector<16x16xf32>
    %68 = arith.extui %67 : vector<16x16xi1> to vector<16x16xi32>
    %69 = arith.sitofp %68 : vector<16x16xi32> to vector<16x16xf32>
    %70 = arith.addf %64, %69 : vector<16x16xf32>
    %71 = vector.extract_strided_slice %21 {offsets = [0, 8], sizes = [16, 1], strides = [1, 1]} : vector<16x16xf32> to vector<16x1xf32>
    %72 = vector.broadcast %71 : vector<16x1xf32> to vector<16x16xf32>
    %73 = arith.cmpf ogt, %72, %21 : vector<16x16xf32>
    %74 = arith.extui %73 : vector<16x16xi1> to vector<16x16xi32>
    %75 = arith.sitofp %74 : vector<16x16xi32> to vector<16x16xf32>
    %76 = arith.addf %70, %75 : vector<16x16xf32>
    %77 = vector.extract_strided_slice %21 {offsets = [0, 9], sizes = [16, 1], strides = [1, 1]} : vector<16x16xf32> to vector<16x1xf32>
    %78 = vector.broadcast %77 : vector<16x1xf32> to vector<16x16xf32>
    %79 = arith.cmpf ogt, %78, %21 : vector<16x16xf32>
    %80 = arith.extui %79 : vector<16x16xi1> to vector<16x16xi32>
    %81 = arith.sitofp %80 : vector<16x16xi32> to vector<16x16xf32>
    %82 = arith.addf %76, %81 : vector<16x16xf32>
    %83 = vector.extract_strided_slice %21 {offsets = [0, 10], sizes = [16, 1], strides = [1, 1]} : vector<16x16xf32> to vector<16x1xf32>
    %84 = vector.broadcast %83 : vector<16x1xf32> to vector<16x16xf32>
    %85 = arith.cmpf ogt, %84, %21 : vector<16x16xf32>
    %86 = arith.extui %85 : vector<16x16xi1> to vector<16x16xi32>
    %87 = arith.sitofp %86 : vector<16x16xi32> to vector<16x16xf32>
    %88 = arith.addf %82, %87 : vector<16x16xf32>
    %89 = vector.extract_strided_slice %21 {offsets = [0, 11], sizes = [16, 1], strides = [1, 1]} : vector<16x16xf32> to vector<16x1xf32>
    %90 = vector.broadcast %89 : vector<16x1xf32> to vector<16x16xf32>
    %91 = arith.cmpf ogt, %90, %21 : vector<16x16xf32>
    %92 = arith.extui %91 : vector<16x16xi1> to vector<16x16xi32>
    %93 = arith.sitofp %92 : vector<16x16xi32> to vector<16x16xf32>
    %94 = arith.addf %88, %93 : vector<16x16xf32>
    %95 = vector.extract_strided_slice %21 {offsets = [0, 12], sizes = [16, 1], strides = [1, 1]} : vector<16x16xf32> to vector<16x1xf32>
    %96 = vector.broadcast %95 : vector<16x1xf32> to vector<16x16xf32>
    %97 = arith.cmpf ogt, %96, %21 : vector<16x16xf32>
    %98 = arith.extui %97 : vector<16x16xi1> to vector<16x16xi32>
    %99 = arith.sitofp %98 : vector<16x16xi32> to vector<16x16xf32>
    %100 = arith.addf %94, %99 : vector<16x16xf32>
    %101 = vector.extract_strided_slice %21 {offsets = [0, 13], sizes = [16, 1], strides = [1, 1]} : vector<16x16xf32> to vector<16x1xf32>
    %102 = vector.broadcast %101 : vector<16x1xf32> to vector<16x16xf32>
    %103 = arith.cmpf ogt, %102, %21 : vector<16x16xf32>
    %104 = arith.extui %103 : vector<16x16xi1> to vector<16x16xi32>
    %105 = arith.sitofp %104 : vector<16x16xi32> to vector<16x16xf32>
    %106 = arith.addf %100, %105 : vector<16x16xf32>
    %107 = vector.extract_strided_slice %21 {offsets = [0, 14], sizes = [16, 1], strides = [1, 1]} : vector<16x16xf32> to vector<16x1xf32>
    %108 = vector.broadcast %107 : vector<16x1xf32> to vector<16x16xf32>
    %109 = arith.cmpf ogt, %108, %21 : vector<16x16xf32>
    %110 = arith.extui %109 : vector<16x16xi1> to vector<16x16xi32>
    %111 = arith.sitofp %110 : vector<16x16xi32> to vector<16x16xf32>
    %112 = arith.addf %106, %111 : vector<16x16xf32>
    %113 = vector.extract_strided_slice %21 {offsets = [0, 15], sizes = [16, 1], strides = [1, 1]} : vector<16x16xf32> to vector<16x1xf32>
    %114 = vector.broadcast %113 : vector<16x1xf32> to vector<16x16xf32>
    %115 = arith.cmpf ogt, %114, %21 : vector<16x16xf32>
    %116 = arith.extui %115 : vector<16x16xi1> to vector<16x16xi32>
    %117 = arith.sitofp %116 : vector<16x16xi32> to vector<16x16xf32>
    %118 = arith.addf %112, %117 : vector<16x16xf32>
    %cst_11 = arith.constant 7.000000e+00 : f32
    %119 = vector.broadcast %cst_11 : f32 to vector<16x16xf32>
    %120 = arith.cmpf olt, %118, %119 : vector<16x16xf32>
    %c0_12 = arith.constant 0 : index
    %c0_13 = arith.constant 0 : index
    %121 = vector.load %arg4[%c0_12, %c0_13] : memref<32x32xf32, #tpu.memory_space<vmem>>, vector<32x32xf32>
    %c0_14 = arith.constant 0 : index
    %c0_15 = arith.constant 0 : index
    %122 = vector.load %arg5[%c0_14, %c0_15] : memref<1x32xf32, #tpu.memory_space<vmem>>, vector<1x32xf32>
    %c0_16 = arith.constant 0 : index
    %c0_17 = arith.constant 0 : index
    %123 = vector.load %arg6[%c0_16, %c0_17] : memref<1x32xf32, #tpu.memory_space<vmem>>, vector<1x32xf32>
    %cst_18 = arith.constant dense<0.000000e+00> : vector<16x32xf32>
    %124 = tpu.matmul %8, %121, %cst_18 {dimension_numbers = #tpu.dot_dimension_numbers<[1], [0], [0], [1], [0, 0, 1, 1], [], []>} : vector<16x32xf32>, vector<32x32xf32>, vector<16x32xf32> -> vector<16x32xf32>
    %125 = vector.broadcast %122 : vector<1x32xf32> to vector<16x32xf32>
    %126 = arith.mulf %124, %125 : vector<16x32xf32>
    %cst_19 = arith.constant dense<0.000000e+00> : vector<16xf32>
    %127 = vector.multi_reduction <add>, %126, %cst_19 [1] : vector<16x32xf32> to vector<16xf32>
    %128 = vector.shape_cast %127 : vector<16xf32> to vector<16x1xf32>
    %cst_20 = arith.constant dense<0.000000e+00> : vector<1x16xf32>
    %129 = tpu.matmul %123, %124, %cst_20 {dimension_numbers = #tpu.dot_dimension_numbers<[1], [1], [0], [0], [0, 0, 1, 0], [], []>} : vector<1x32xf32>, vector<16x32xf32>, vector<1x16xf32> -> vector<1x16xf32>
    %130 = vector.broadcast %128 : vector<16x1xf32> to vector<16x16xf32>
    %131 = vector.broadcast %129 : vector<1x16xf32> to vector<16x16xf32>
    %132 = arith.addf %130, %131 : vector<16x16xf32>
    %cst_21 = arith.constant 0.000000e+00 : f32
    %133 = vector.broadcast %cst_21 : f32 to vector<16x16xf32>
    %134 = arith.cmpf ogt, %132, %133 : vector<16x16xf32>
    %cst_22 = arith.constant 2.000000e-01 : f32
    %135 = vector.broadcast %cst_22 : f32 to vector<16x16xf32>
    %136 = arith.mulf %135, %132 : vector<16x16xf32>
    %137 = arith.select %134, %132, %136 : vector<16x16xi1>, vector<16x16xf32>
    %cst_23 = arith.constant -9.000000e+15 : f32
    %138 = vector.broadcast %cst_23 : f32 to vector<16x16xf32>
    %139 = arith.select %120, %137, %138 : vector<16x16xi1>, vector<16x16xf32>
    %cst_24 = arith.constant dense<0xFF800000> : vector<16xf32>
    %140 = vector.multi_reduction <maximumf>, %139, %cst_24 [1] : vector<16x16xf32> to vector<16xf32>
    %141 = vector.shape_cast %140 : vector<16xf32> to vector<16x1xf32>
    %142 = vector.broadcast %141 : vector<16x1xf32> to vector<16x16xf32>
    %143 = arith.subf %139, %142 : vector<16x16xf32>
    %144 = math.exp %143 : vector<16x16xf32>
    %cst_25 = arith.constant dense<0.000000e+00> : vector<16xf32>
    %145 = vector.multi_reduction <add>, %144, %cst_25 [1] : vector<16x16xf32> to vector<16xf32>
    %146 = vector.shape_cast %145 : vector<16xf32> to vector<16x1xf32>
    %147 = vector.broadcast %146 : vector<16x1xf32> to vector<16x16xf32>
    %148 = arith.divf %144, %147 : vector<16x16xf32>
    %cst_26 = arith.constant dense<0.000000e+00> : vector<16x32xf32>
    %149 = tpu.matmul %148, %124, %cst_26 {dimension_numbers = #tpu.dot_dimension_numbers<[1], [0], [0], [1], [0, 0, 1, 1], [], []>} : vector<16x16xf32>, vector<16x32xf32>, vector<16x32xf32> -> vector<16x32xf32>
    %cst_27 = arith.constant 0.000000e+00 : f32
    %150 = vector.broadcast %cst_27 : f32 to vector<16x32xf32>
    %151 = arith.cmpf ogt, %149, %150 : vector<16x32xf32>
    %cst_28 = arith.constant 0.000000e+00 : f32
    %152 = vector.broadcast %cst_28 : f32 to vector<16x32xf32>
    %153 = arith.minimumf %149, %152 : vector<16x32xf32>
    %154 = math.exp %153 : vector<16x32xf32>
    %cst_29 = arith.constant 1.000000e+00 : f32
    %155 = vector.broadcast %cst_29 : f32 to vector<16x32xf32>
    %156 = arith.subf %154, %155 : vector<16x32xf32>
    %157 = arith.select %151, %149, %156 : vector<16x32xi1>, vector<16x32xf32>
    %c0_30 = arith.constant 0 : index
    %c0_31 = arith.constant 0 : index
    %158 = vector.load %arg7[%c0_30, %c0_31] : memref<32x32xf32, #tpu.memory_space<vmem>>, vector<32x32xf32>
    %c0_32 = arith.constant 0 : index
    %c0_33 = arith.constant 0 : index
    %159 = vector.load %arg8[%c0_32, %c0_33] : memref<1x32xf32, #tpu.memory_space<vmem>>, vector<1x32xf32>
    %c0_34 = arith.constant 0 : index
    %c0_35 = arith.constant 0 : index
    %160 = vector.load %arg9[%c0_34, %c0_35] : memref<1x32xf32, #tpu.memory_space<vmem>>, vector<1x32xf32>
    %cst_36 = arith.constant dense<0.000000e+00> : vector<16x32xf32>
    %161 = tpu.matmul %157, %158, %cst_36 {dimension_numbers = #tpu.dot_dimension_numbers<[1], [0], [0], [1], [0, 0, 1, 1], [], []>} : vector<16x32xf32>, vector<32x32xf32>, vector<16x32xf32> -> vector<16x32xf32>
    %162 = vector.broadcast %159 : vector<1x32xf32> to vector<16x32xf32>
    %163 = arith.mulf %161, %162 : vector<16x32xf32>
    %cst_37 = arith.constant dense<0.000000e+00> : vector<16xf32>
    %164 = vector.multi_reduction <add>, %163, %cst_37 [1] : vector<16x32xf32> to vector<16xf32>
    %165 = vector.shape_cast %164 : vector<16xf32> to vector<16x1xf32>
    %cst_38 = arith.constant dense<0.000000e+00> : vector<1x16xf32>
    %166 = tpu.matmul %160, %161, %cst_38 {dimension_numbers = #tpu.dot_dimension_numbers<[1], [1], [0], [0], [0, 0, 1, 0], [], []>} : vector<1x32xf32>, vector<16x32xf32>, vector<1x16xf32> -> vector<1x16xf32>
    %167 = vector.broadcast %165 : vector<16x1xf32> to vector<16x16xf32>
    %168 = vector.broadcast %166 : vector<1x16xf32> to vector<16x16xf32>
    %169 = arith.addf %167, %168 : vector<16x16xf32>
    %cst_39 = arith.constant 0.000000e+00 : f32
    %170 = vector.broadcast %cst_39 : f32 to vector<16x16xf32>
    %171 = arith.cmpf ogt, %169, %170 : vector<16x16xf32>
    %cst_40 = arith.constant 2.000000e-01 : f32
    %172 = vector.broadcast %cst_40 : f32 to vector<16x16xf32>
    %173 = arith.mulf %172, %169 : vector<16x16xf32>
    %174 = arith.select %171, %169, %173 : vector<16x16xi1>, vector<16x16xf32>
    %cst_41 = arith.constant -9.000000e+15 : f32
    %175 = vector.broadcast %cst_41 : f32 to vector<16x16xf32>
    %176 = arith.select %120, %174, %175 : vector<16x16xi1>, vector<16x16xf32>
    %cst_42 = arith.constant dense<0xFF800000> : vector<16xf32>
    %177 = vector.multi_reduction <maximumf>, %176, %cst_42 [1] : vector<16x16xf32> to vector<16xf32>
    %178 = vector.shape_cast %177 : vector<16xf32> to vector<16x1xf32>
    %179 = vector.broadcast %178 : vector<16x1xf32> to vector<16x16xf32>
    %180 = arith.subf %176, %179 : vector<16x16xf32>
    %181 = math.exp %180 : vector<16x16xf32>
    %cst_43 = arith.constant dense<0.000000e+00> : vector<16xf32>
    %182 = vector.multi_reduction <add>, %181, %cst_43 [1] : vector<16x16xf32> to vector<16xf32>
    %183 = vector.shape_cast %182 : vector<16xf32> to vector<16x1xf32>
    %184 = vector.broadcast %183 : vector<16x1xf32> to vector<16x16xf32>
    %185 = arith.divf %181, %184 : vector<16x16xf32>
    %cst_44 = arith.constant dense<0.000000e+00> : vector<16x32xf32>
    %186 = tpu.matmul %185, %161, %cst_44 {dimension_numbers = #tpu.dot_dimension_numbers<[1], [0], [0], [1], [0, 0, 1, 1], [], []>} : vector<16x16xf32>, vector<16x32xf32>, vector<16x32xf32> -> vector<16x32xf32>
    %cst_45 = arith.constant 0.000000e+00 : f32
    %187 = vector.broadcast %cst_45 : f32 to vector<16x32xf32>
    %188 = arith.cmpf ogt, %186, %187 : vector<16x32xf32>
    %cst_46 = arith.constant 0.000000e+00 : f32
    %189 = vector.broadcast %cst_46 : f32 to vector<16x32xf32>
    %190 = arith.minimumf %186, %189 : vector<16x32xf32>
    %191 = math.exp %190 : vector<16x32xf32>
    %cst_47 = arith.constant 1.000000e+00 : f32
    %192 = vector.broadcast %cst_47 : f32 to vector<16x32xf32>
    %193 = arith.subf %191, %192 : vector<16x32xf32>
    %194 = arith.select %188, %186, %193 : vector<16x32xi1>, vector<16x32xf32>
    %c0_48 = arith.constant 0 : index
    %c0_49 = arith.constant 0 : index
    %195 = vector.load %arg10[%c0_48, %c0_49] : memref<32x288xf32, #tpu.memory_space<vmem>>, vector<32x288xf32>
    %cst_50 = arith.constant dense<0.000000e+00> : vector<16x288xf32>
    %196 = tpu.matmul %194, %195, %cst_50 {dimension_numbers = #tpu.dot_dimension_numbers<[1], [0], [0], [1], [0, 0, 1, 1], [], []>} : vector<16x32xf32>, vector<32x288xf32>, vector<16x288xf32> -> vector<16x288xf32>
    %c0_51 = arith.constant 0 : index
    %c0_52 = arith.constant 0 : index
    %197 = vector.load %arg11[%c0_51, %c0_52] : memref<1x288xf32, #tpu.memory_space<vmem>>, vector<1x288xf32>
    %198 = vector.broadcast %197 : vector<1x288xf32> to vector<16x288xf32>
    %199 = arith.addf %196, %198 : vector<16x288xf32>
    %200 = arith.addf %199, %1 : vector<16x288xf32>
    %cst_53 = arith.constant 0.000000e+00 : f32
    %201 = vector.broadcast %cst_53 : f32 to vector<16x288xf32>
    %202 = arith.maximumf %200, %201 : vector<16x288xf32>
    %c0_54 = arith.constant 0 : index
    %c0_55 = arith.constant 0 : index
    %203 = vector.load %arg12[%c0_54, %c0_55] : memref<288x288xf32, #tpu.memory_space<vmem>>, vector<288x288xf32>
    %cst_56 = arith.constant dense<0.000000e+00> : vector<16x288xf32>
    %204 = tpu.matmul %202, %203, %cst_56 {dimension_numbers = #tpu.dot_dimension_numbers<[1], [0], [0], [1], [0, 0, 1, 1], [], []>} : vector<16x288xf32>, vector<288x288xf32>, vector<16x288xf32> -> vector<16x288xf32>
    %c0_57 = arith.constant 0 : index
    %c0_58 = arith.constant 0 : index
    %205 = vector.load %arg13[%c0_57, %c0_58] : memref<1x288xf32, #tpu.memory_space<vmem>>, vector<1x288xf32>
    %206 = vector.broadcast %205 : vector<1x288xf32> to vector<16x288xf32>
    %207 = arith.addf %204, %206 : vector<16x288xf32>
    %c0_59 = arith.constant 0 : index
    %c0_60 = arith.constant 0 : index
    %c0_61 = arith.constant 0 : index
    %208 = vector.load %arg14[%c0_59, %c0_60, %c0_61] : memref<1x16x288xf32, #tpu.memory_space<vmem>>, vector<1x16x288xf32>
    %209 = vector.shape_cast %208 : vector<1x16x288xf32> to vector<16x288xf32>
    %210 = vector.shape_cast %207 : vector<16x288xf32> to vector<1x16x288xf32>
    tpu.vector_store %arg14[%c0_59, %c0_60, %c0_61], %210 {strides = array<i32>} : memref<1x16x288xf32, #tpu.memory_space<vmem>>, vector<1x16x288xf32>,
    return
  }
  func.func @transform_0(%arg0: i32) -> (i32, i32, i32) {
    %c0_i32 = arith.constant 0 : i32
    %c0_i32_0 = arith.constant 0 : i32
    %c0_i32_1 = arith.constant 0 : i32
    return %arg0, %c0_i32, %c0_i32_0 : i32, i32, i32
  }
  func.func @transform_1(%arg0: i32) -> (i32, i32) {
    %c0_i32 = arith.constant 0 : i32
    %c0_i32_0 = arith.constant 0 : i32
    %c0_i32_1 = arith.constant 0 : i32
    return %c0_i32, %c0_i32_0 : i32, i32
  }
  func.func @transform_2(%arg0: i32) -> (i32, i32) {
    %c0_i32 = arith.constant 0 : i32
    %c0_i32_0 = arith.constant 0 : i32
    %c0_i32_1 = arith.constant 0 : i32
    return %c0_i32, %c0_i32_0 : i32, i32
  }
  func.func @transform_3(%arg0: i32) -> (i32, i32) {
    %c0_i32 = arith.constant 0 : i32
    %c0_i32_0 = arith.constant 0 : i32
    %c0_i32_1 = arith.constant 0 : i32
    return %c0_i32, %c0_i32_0 : i32, i32
  }
  func.func @transform_4(%arg0: i32) -> (i32, i32) {
    %c0_i32 = arith.constant 0 : i32
    %c0_i32_0 = arith.constant 0 : i32
    %c0_i32_1 = arith.constant 0 : i32
    return %c0_i32, %c0_i32_0 : i32, i32
  }
  func.func @transform_5(%arg0: i32) -> (i32, i32) {
    %c0_i32 = arith.constant 0 : i32
    %c0_i32_0 = arith.constant 0 : i32
    %c0_i32_1 = arith.constant 0 : i32
    return %c0_i32, %c0_i32_0 : i32, i32
  }
  func.func @transform_6(%arg0: i32) -> (i32, i32) {
    %c0_i32 = arith.constant 0 : i32
    %c0_i32_0 = arith.constant 0 : i32
    %c0_i32_1 = arith.constant 0 : i32
    return %c0_i32, %c0_i32_0 : i32, i32
  }
  func.func @transform_7(%arg0: i32) -> (i32, i32) {
    %c0_i32 = arith.constant 0 : i32
    %c0_i32_0 = arith.constant 0 : i32
    %c0_i32_1 = arith.constant 0 : i32
    return %c0_i32, %c0_i32_0 : i32, i32
  }
  func.func @transform_8(%arg0: i32) -> (i32, i32) {
    %c0_i32 = arith.constant 0 : i32
    %c0_i32_0 = arith.constant 0 : i32
    %c0_i32_1 = arith.constant 0 : i32
    return %c0_i32, %c0_i32_0 : i32, i32
  }
  func.func @transform_9(%arg0: i32) -> (i32, i32) {
    %c0_i32 = arith.constant 0 : i32
    %c0_i32_0 = arith.constant 0 : i32
    %c0_i32_1 = arith.constant 0 : i32
    return %c0_i32, %c0_i32_0 : i32, i32
  }
  func.func @transform_10(%arg0: i32) -> (i32, i32) {
    %c0_i32 = arith.constant 0 : i32
    %c0_i32_0 = arith.constant 0 : i32
    %c0_i32_1 = arith.constant 0 : i32
    return %c0_i32, %c0_i32_0 : i32, i32
  }
  func.func @transform_11(%arg0: i32) -> (i32, i32) {
    %c0_i32 = arith.constant 0 : i32
    %c0_i32_0 = arith.constant 0 : i32
    %c0_i32_1 = arith.constant 0 : i32
    return %c0_i32, %c0_i32_0 : i32, i32
  }
  func.func @transform_12(%arg0: i32) -> (i32, i32) {
    %c0_i32 = arith.constant 0 : i32
    %c0_i32_0 = arith.constant 0 : i32
    %c0_i32_1 = arith.constant 0 : i32
    return %c0_i32, %c0_i32_0 : i32, i32
  }
  func.func @transform_13(%arg0: i32) -> (i32, i32, i32) {
    %c0_i32 = arith.constant 0 : i32
    %c0_i32_0 = arith.constant 0 : i32
    %c0_i32_1 = arith.constant 0 : i32
    return %arg0, %c0_i32, %c0_i32_0 : i32, i32, i32
  }
}

</mosaic_0001>

<llo_original>
// kernel: tpmfb_forward.1
$region0: #{tpmfb_forward.1}
  #allocation0 [shape = 'u32[]', space=smem, size = 0x4, offset = 0x4, fixed_abs, tag = 'smem constant byte address 0x4 - core index']
  #allocation1 [shape = 'u32[72,128]{1,0:T(1,128)}', space=vmem, size = 0x9000, scoped, tag = 'internal scratch']
  %s0 = inlined_call_operand.vmem [shape: f32[2,16,288], index: 0, kind: input, shape index: {}]
  %s1 = inlined_call_operand.vmem [shape: f32[288,32], index: 1, kind: input, shape index: {}]
  %s2 = inlined_call_operand.vmem [shape: f32[1,32], index: 2, kind: input, shape index: {}]
  %s3 = inlined_call_operand.vmem [shape: f32[32,32], index: 3, kind: input, shape index: {}]
  %s4 = inlined_call_operand.vmem [shape: f32[1,32], index: 4, kind: input, shape index: {}]
  %s5 = inlined_call_operand.vmem [shape: f32[1,32], index: 5, kind: input, shape index: {}]
  %s6 = inlined_call_operand.vmem [shape: f32[32,32], index: 6, kind: input, shape index: {}]
  %s7 = inlined_call_operand.vmem [shape: f32[1,32], index: 7, kind: input, shape index: {}]
  %s8 = inlined_call_operand.vmem [shape: f32[1,32], index: 8, kind: input, shape index: {}]
  %s9 = inlined_call_operand.vmem [shape: f32[32,288], index: 9, kind: input, shape index: {}]
  %s10 = inlined_call_operand.vmem [shape: f32[1,288], index: 10, kind: input, shape index: {}]
  %s11 = inlined_call_operand.vmem [shape: f32[288,288], index: 11, kind: input, shape index: {}]
  %s12 = inlined_call_operand.vmem [shape: f32[1,288], index: 12, kind: input, shape index: {}]
  %s13 = inlined_call_operand.vmem [shape: f32[2,16,288], index: 13, kind: output, shape index: {}]
  %s14 = sld [smem:[#allocation0]]
  $region85: #{tpmfb_forward.1} parent=0
    _
  %s16 = ssub.s32 1, %s14
  %s17 = scalar_select 0, %s16, %s14
  loop: start=0, step=1, limit=4
  $region2: #{tpmfb_forward.1} parent=0 // loop_pre_header
    _
  $region3: #{tpmfb_forward.1} parent=0 // loop_header
    %s19 = sphi 0, %s23
    %p20 = scmp.ge.s32.totalorder %s19, 4
    %s29 = sphi 0, %s31
    %s32 = sphi 0, %s29
    %s33 = sphi 0, %s32
    %s49 = sphi 0, %s33
    %s53 = sphi 0, %s53
    %s55 = sphi 0, %s53
    %s56 = sphi 0, %s55
    %s70 = sphi 0, %s56
    %s74 = sphi 0, %s74
    %s76 = sphi 0, %s74
    %s77 = sphi 0, %s76
    %s91 = sphi 0, %s77
    %s95 = sphi 0, %s95
    %s97 = sphi 0, %s95
    %s98 = sphi 0, %s97
    %s112 = sphi 0, %s98
    %s116 = sphi 0, %s116
    %s118 = sphi 0, %s116
    %s119 = sphi 0, %s118
    %s133 = sphi 0, %s119
    %s137 = sphi 0, %s137
    %s139 = sphi 0, %s137
    %s140 = sphi 0, %s139
    %s154 = sphi 0, %s140
    %s158 = sphi 0, %s158
    %s160 = sphi 0, %s158
    %s161 = sphi 0, %s160
    %s175 = sphi 0, %s161
    %s179 = sphi 0, %s179
    %s181 = sphi 0, %s179
    %s182 = sphi 0, %s181
    %s196 = sphi 0, %s182
    %s200 = sphi 0, %s200
    %s202 = sphi 0, %s200
    %s203 = sphi 0, %s202
    %s217 = sphi 0, %s203
    %s221 = sphi 0, %s221
    %s223 = sphi 0, %s221
    %s224 = sphi 0, %s223
    %s238 = sphi 0, %s224
    %s242 = sphi 0, %s242
    %s244 = sphi 0, %s242
    %s245 = sphi 0, %s244
    %s259 = sphi 0, %s245
    %s263 = sphi 0, %s263
    %s265 = sphi 0, %s263
    %s266 = sphi 0, %s265
    %s280 = sphi 0, %s266
    %s284 = sphi 0, %s284
    %s286 = sphi 0, %s284
    %s287 = sphi 0, %s286
    %s301 = sphi 0, %s287
    %s307 = sphi 0, %s309
    %s310 = sphi 0, %s307
    %s311 = sphi 0, %s310
    %s327 = sphi 0, %s311
  $region4: #{tpmfb_forward.1} parent=0 // loop_header_branch
    %22 = sbr.rel (%p20) target = $region8
  $region5: #{tpmfb_forward.1} parent=0 // loop_body
    %s24 = ssub.s32 %s19, 1
    %s25 = ssub.s32 %s19, 2
    %s26 = sadd.s32 %s19, 1
    %s27 = ssub.s32 %s19, %s26
    %p28 = scmp.eq.s32.totalorder %s27, 0
    %s30 = sadd.s32 %s29, 1
    %s31 = scalar_select %p28, %s29, %s30
    %p34 = pneg %p28
    %p35 = scmp.eq.s32.totalorder %s19, 1
    %p36 = por %p34, %p35
    %p37 = scmp.ne.s32.totalorder %s29, %s32
    %p38 = scmp.eq.s32.totalorder %s19, 0
    %p39 = por %p37, %p38
    %p40 = scmp.ne.s32.totalorder %s29, %s32
    %p41 = scmp.eq.s32.totalorder %s24, 1
    %p42 = por %p40, %p41
    %p43 = scmp.ne.s32.totalorder %s32, %s33
    %p44 = scmp.eq.s32.totalorder %s24, 0
    %p45 = por %p43, %p44
    %p46 = scmp.ne.s32.totalorder %s32, %s33
    %p47 = scmp.eq.s32.totalorder %s25, 1
    %p48 = por %p46, %p47
    %p50 = scmp.ne.s32.totalorder %s33, %s49
    %p51 = scmp.eq.s32.totalorder %s25, 0
    %p52 = por %p50, %p51
    %s54 = sadd.s32 %s53, 1
    %p57 = scmp.eq.s32.totalorder %s19, 1
    %p58 = scmp.ne.s32.totalorder %s53, %s55
    %p59 = scmp.eq.s32.totalorder %s19, 0
    %p60 = por %p58, %p59
    %p61 = scmp.ne.s32.totalorder %s53, %s55
    %p62 = scmp.eq.s32.totalorder %s24, 1
    %p63 = por %p61, %p62
    %p64 = scmp.ne.s32.totalorder %s55, %s56
    %p65 = scmp.eq.s32.totalorder %s24, 0
    %p66 = por %p64, %p65
    %p67 = scmp.ne.s32.totalorder %s55, %s56
    %p68 = scmp.eq.s32.totalorder %s25, 1
    %p69 = por %p67, %p68
    %p71 = scmp.ne.s32.totalorder %s56, %s70
    %p72 = scmp.eq.s32.totalorder %s25, 0
    %p73 = por %p71, %p72
    %s75 = sadd.s32 %s74, 1
    %p78 = scmp.eq.s32.totalorder %s19, 1
    %p79 = scmp.ne.s32.totalorder %s74, %s76
    %p80 = scmp.eq.s32.totalorder %s19, 0
    %p81 = por %p79, %p80
    %p82 = scmp.ne.s32.totalorder %s74, %s76
    %p83 = scmp.eq.s32.totalorder %s24, 1
    %p84 = por %p82, %p83
    %p85 = scmp.ne.s32.totalorder %s76, %s77
    %p86 = scmp.eq.s32.totalorder %s24, 0
    %p87 = por %p85, %p86
    %p88 = scmp.ne.s32.totalorder %s76, %s77
    %p89 = scmp.eq.s32.totalorder %s25, 1
    %p90 = por %p88, %p89
    %p92 = scmp.ne.s32.totalorder %s77, %s91
    %p93 = scmp.eq.s32.totalorder %s25, 0
    %p94 = por %p92, %p93
    %s96 = sadd.s32 %s95, 1
    %p99 = scmp.eq.s32.totalorder %s19, 1
    %p100 = scmp.ne.s32.totalorder %s95, %s97
    %p101 = scmp.eq.s32.totalorder %s19, 0
    %p102 = por %p100, %p101
    %p103 = scmp.ne.s32.totalorder %s95, %s97
    %p104 = scmp.eq.s32.totalorder %s24, 1
    %p105 = por %p103, %p104
    %p106 = scmp.ne.s32.totalorder %s97, %s98
    %p107 = scmp.eq.s32.totalorder %s24, 0
    %p108 = por %p106, %p107
    %p109 = scmp.ne.s32.totalorder %s97, %s98
    %p110 = scmp.eq.s32.totalorder %s25, 1
    %p111 = por %p109, %p110
    %p113 = scmp.ne.s32.totalorder %s98, %s112
    %p114 = scmp.eq.s32.totalorder %s25, 0
    %p115 = por %p113, %p114
    %s117 = sadd.s32 %s116, 1
    %p120 = scmp.eq.s32.totalorder %s19, 1
    %p121 = scmp.ne.s32.totalorder %s116, %s118
    %p122 = scmp.eq.s32.totalorder %s19, 0
    %p123 = por %p121, %p122
    %p124 = scmp.ne.s32.totalorder %s116, %s118
    %p125 = scmp.eq.s32.totalorder %s24, 1
    %p126 = por %p124, %p125
    %p127 = scmp.ne.s32.totalorder %s118, %s119
    %p128 = scmp.eq.s32.totalorder %s24, 0
    %p129 = por %p127, %p128
    %p130 = scmp.ne.s32.totalorder %s118, %s119
    %p131 = scmp.eq.s32.totalorder %s25, 1
    %p132 = por %p130, %p131
    %p134 = scmp.ne.s32.totalorder %s119, %s133
    %p135 = scmp.eq.s32.totalorder %s25, 0
    %p136 = por %p134, %p135
    %s138 = sadd.s32 %s137, 1
    %p141 = scmp.eq.s32.totalorder %s19, 1
    %p142 = scmp.ne.s32.totalorder %s137, %s139
    %p143 = scmp.eq.s32.totalorder %s19, 0
    %p144 = por %p142, %p143
    %p145 = scmp.ne.s32.totalorder %s137, %s139
    %p146 = scmp.eq.s32.totalorder %s24, 1
    %p147 = por %p145, %p146
    %p148 = scmp.ne.s32.totalorder %s139, %s140
    %p149 = scmp.eq.s32.totalorder %s24, 0
    %p150 = por %p148, %p149
    %p151 = scmp.ne.s32.totalorder %s139, %s140
    %p152 = scmp.eq.s32.totalorder %s25, 1
    %p153 = por %p151, %p152
    %p155 = scmp.ne.s32.totalorder %s140, %s154
    %p156 = scmp.eq.s32.totalorder %s25, 0
    %p157 = por %p155, %p156
    %s159 = sadd.s32 %s158, 1
    %p162 = scmp.eq.s32.totalorder %s19, 1
    %p163 = scmp.ne.s32.totalorder %s158, %s160
    %p164 = scmp.eq.s32.totalorder %s19, 0
    %p165 = por %p163, %p164
    %p166 = scmp.ne.s32.totalorder %s158, %s160
    %p167 = scmp.eq.s32.totalorder %s24, 1
    %p168 = por %p166, %p167
    %p169 = scmp.ne.s32.totalorder %s160, %s161
    %p170 = scmp.eq.s32.totalorder %s24, 0
    %p171 = por %p169, %p170
    %p172 = scmp.ne.s32.totalorder %s160, %s161
    %p173 = scmp.eq.s32.totalorder %s25, 1
    %p174 = por %p172, %p173
    %p176 = scmp.ne.s32.totalorder %s161, %s175
    %p177 = scmp.eq.s32.totalorder %s25, 0
    %p178 = por %p176, %p177
    %s180 = sadd.s32 %s179, 1
    %p183 = scmp.eq.s32.totalorder %s19, 1
    %p184 = scmp.ne.s32.totalorder %s179, %s181
    %p185 = scmp.eq.s32.totalorder %s19, 0
    %p186 = por %p184, %p185
    %p187 = scmp.ne.s32.totalorder %s179, %s181
    %p188 = scmp.eq.s32.totalorder %s24, 1
    %p189 = por %p187, %p188
    %p190 = scmp.ne.s32.totalorder %s181, %s182
    %p191 = scmp.eq.s32.totalorder %s24, 0
    %p192 = por %p190, %p191
    %p193 = scmp.ne.s32.totalorder %s181, %s182
    %p194 = scmp.eq.s32.totalorder %s25, 1
    %p195 = por %p193, %p194
    %p197 = scmp.ne.s32.totalorder %s182, %s196
    %p198 = scmp.eq.s32.totalorder %s25, 0
    %p199 = por %p197, %p198
    %s201 = sadd.s32 %s200, 1
    %p204 = scmp.eq.s32.totalorder %s19, 1
    %p205 = scmp.ne.s32.totalorder %s200, %s202
    %p206 = scmp.eq.s32.totalorder %s19, 0
    %p207 = por %p205, %p206
    %p208 = scmp.ne.s32.totalorder %s200, %s202
    %p209 = scmp.eq.s32.totalorder %s24, 1
    %p210 = por %p208, %p209
    %p211 = scmp.ne.s32.totalorder %s202, %s203
    %p212 = scmp.eq.s32.totalorder %s24, 0
    %p213 = por %p211, %p212
    %p214 = scmp.ne.s32.totalorder %s202, %s203
    %p215 = scmp.eq.s32.totalorder %s25, 1
    %p216 = por %p214, %p215
    %p218 = scmp.ne.s32.totalorder %s203, %s217
    %p219 = scmp.eq.s32.totalorder %s25, 0
    %p220 = por %p218, %p219
    %s222 = sadd.s32 %s221, 1
    %p225 = scmp.eq.s32.totalorder %s19, 1
    %p226 = scmp.ne.s32.totalorder %s221, %s223
    %p227 = scmp.eq.s32.totalorder %s19, 0
    %p228 = por %p226, %p227
    %p229 = scmp.ne.s32.totalorder %s221, %s223
    %p230 = scmp.eq.s32.totalorder %s24, 1
    %p231 = por %p229, %p230
    %p232 = scmp.ne.s32.totalorder %s223, %s224
    %p233 = scmp.eq.s32.totalorder %s24, 0
    %p234 = por %p232, %p233
    %p235 = scmp.ne.s32.totalorder %s223, %s224
    %p236 = scmp.eq.s32.totalorder %s25, 1
    %p237 = por %p235, %p236
    %p239 = scmp.ne.s32.totalorder %s224, %s238
    %p240 = scmp.eq.s32.totalorder %s25, 0
    %p241 = por %p239, %p240
    %s243 = sadd.s32 %s242, 1
    %p246 = scmp.eq.s32.totalorder %s19, 1
    %p247 = scmp.ne.s32.totalorder %s242, %s244
    %p248 = scmp.eq.s32.totalorder %s19, 0
    %p249 = por %p247, %p248
    %p250 = scmp.ne.s32.totalorder %s242, %s244
    %p251 = scmp.eq.s32.totalorder %s24, 1
    %p252 = por %p250, %p251
    %p253 = scmp.ne.s32.totalorder %s244, %s245
    %p254 = scmp.eq.s32.totalorder %s24, 0
    %p255 = por %p253, %p254
    %p256 = scmp.ne.s32.totalorder %s244, %s245
    %p257 = scmp.eq.s32.totalorder %s25, 1
    %p258 = por %p256, %p257
    %p260 = scmp.ne.s32.totalorder %s245, %s259
    %p261 = scmp.eq.s32.totalorder %s25, 0
    %p262 = por %p260, %p261
    %s264 = sadd.s32 %s263, 1
    %p267 = scmp.eq.s32.totalorder %s19, 1
    %p268 = scmp.ne.s32.totalorder %s263, %s265
    %p269 = scmp.eq.s32.totalorder %s19, 0
    %p270 = por %p268, %p269
    %p271 = scmp.ne.s32.totalorder %s263, %s265
    %p272 = scmp.eq.s32.totalorder %s24, 1
    %p273 = por %p271, %p272
    %p274 = scmp.ne.s32.totalorder %s265, %s266
    %p275 = scmp.eq.s32.totalorder %s24, 0
    %p276 = por %p274, %p275
    %p277 = scmp.ne.s32.totalorder %s265, %s266
    %p278 = scmp.eq.s32.totalorder %s25, 1
    %p279 = por %p277, %p278
    %p281 = scmp.ne.s32.totalorder %s266, %s280
    %p282 = scmp.eq.s32.totalorder %s25, 0
    %p283 = por %p281, %p282
    %s285 = sadd.s32 %s284, 1
    %p288 = scmp.eq.s32.totalorder %s19, 1
    %p289 = scmp.ne.s32.totalorder %s284, %s286
    %p290 = scmp.eq.s32.totalorder %s19, 0
    %p291 = por %p289, %p290
    %p292 = scmp.ne.s32.totalorder %s284, %s286
    %p293 = scmp.eq.s32.totalorder %s24, 1
    %p294 = por %p292, %p293
    %p295 = scmp.ne.s32.totalorder %s286, %s287
    %p296 = scmp.eq.s32.totalorder %s24, 0
    %p297 = por %p295, %p296
    %p298 = scmp.ne.s32.totalorder %s286, %s287
    %p299 = scmp.eq.s32.totalorder %s25, 1
    %p300 = por %p298, %p299
    %p302 = scmp.ne.s32.totalorder %s287, %s301
    %p303 = scmp.eq.s32.totalorder %s25, 0
    %p304 = por %p302, %p303
    %s305 = ssub.s32 %s19, %s26
    %p306 = scmp.eq.s32.totalorder %s305, 0
    %s308 = sadd.s32 %s307, 1
    %s309 = scalar_select %p306, %s307, %s308
    %p312 = pneg %p306
    %p313 = scmp.eq.s32.totalorder %s19, 1
    %p314 = por %p312, %p313
    %p315 = scmp.ne.s32.totalorder %s307, %s310
    %p316 = scmp.eq.s32.totalorder %s19, 0
    %p317 = por %p315, %p316
    %p318 = scmp.ne.s32.totalorder %s307, %s310
    %p319 = scmp.eq.s32.totalorder %s24, 1
    %p320 = por %p318, %p319
    %p321 = scmp.ne.s32.totalorder %s310, %s311
    %p322 = scmp.eq.s32.totalorder %s24, 0
    %p323 = por %p321, %p322
    %p324 = scmp.ne.s32.totalorder %s310, %s311
    %p325 = scmp.eq.s32.totalorder %s25, 1
    %p326 = por %p324, %p325
    %p328 = scmp.ne.s32.totalorder %s311, %s327
    %p329 = scmp.eq.s32.totalorder %s25, 0
    %p330 = por %p328, %p329
    %p331 = scmp.le.s32.totalorder 1, %s19
    %p332 = scmp.lt.s32.totalorder %s19, 3
    %p333 = pnand %p331, %p332
    %p334 = pneg %p333
    // Predicated region
    $region9: #{tpmfb_forward.1} parent=5 // pred_check
      _
    $region10: #{tpmfb_forward.1} parent=5 // pred_check_branch
      %336 = sbr.rel (%p333) target = $region12
    $region11: #{tpmfb_forward.1} parent=5 // pred_region
      %s337 = ssub.s32 %s19, 1
      // Predicated region
      $region13: #{tpmfb_forward.1} parent=11 // pred_check
        %p338 = pneg %p66
      $region14: #{tpmfb_forward.1} parent=11 // pred_check_branch
        %340 = sbr.rel (%p338) target = $region16
      $region15: #{tpmfb_forward.1} parent=11 // pred_region
        _
      $region16: #{tpmfb_forward.1} parent=11 // pred_fallthru
        _
      // Predicated region
      $region17: #{tpmfb_forward.1} parent=11 // pred_check
        %p341 = pneg %p87
      $region18: #{tpmfb_forward.1} parent=11 // pred_check_branch
        %343 = sbr.rel (%p341) target = $region20
      $region19: #{tpmfb_forward.1} parent=11 // pred_region
        _
      $region20: #{tpmfb_forward.1} parent=11 // pred_fallthru
        _
      // Predicated region
      $region21: #{tpmfb_forward.1} parent=11 // pred_check
        %p344 = pneg %p108
      $region22: #{tpmfb_forward.1} parent=11 // pred_check_branch
        %346 = sbr.rel (%p344) target = $region24
      $region23: #{tpmfb_forward.1} parent=11 // pred_region
        _
      $region24: #{tpmfb_forward.1} parent=11 // pred_fallthru
        _
      // Predicated region
      $region25: #{tpmfb_forward.1} parent=11 // pred_check
        %p347 = pneg %p129
      $region26: #{tpmfb_forward.1} parent=11 // pred_check_branch
        %349 = sbr.rel (%p347) target = $region28
      $region27: #{tpmfb_forward.1} parent=11 // pred_region
        _
      $region28: #{tpmfb_forward.1} parent=11 // pred_fallthru
        _
      // Predicated region
      $region29: #{tpmfb_forward.1} parent=11 // pred_check
        %p350 = pneg %p150
      $region30: #{tpmfb_forward.1} parent=11 // pred_check_branch
        %352 = sbr.rel (%p350) target = $region32
      $region31: #{tpmfb_forward.1} parent=11 // pred_region
        _
      $region32: #{tpmfb_forward.1} parent=11 // pred_fallthru
        _
      // Predicated region
      $region33: #{tpmfb_forward.1} parent=11 // pred_check
        %p353 = pneg %p171
      $region34: #{tpmfb_forward.1} parent=11 // pred_check_branch
        %355 = sbr.rel (%p353) target = $region36
      $region35: #{tpmfb_forward.1} parent=11 // pred_region
        _
      $region36: #{tpmfb_forward.1} parent=11 // pred_fallthru
        _
      // Predicated region
      $region37: #{tpmfb_forward.1} parent=11 // pred_check
        %p356 = pneg %p192
      $region38: #{tpmfb_forward.1} parent=11 // pred_check_branch
        %358 = sbr.rel (%p356) target = $region40
      $region39: #{tpmfb_forward.1} parent=11 // pred_region
        _
      $region40: #{tpmfb_forward.1} parent=11 // pred_fallthru
        _
      // Predicated region
      $region41: #{tpmfb_forward.1} parent=11 // pred_check
        %p359 = pneg %p213
      $region42: #{tpmfb_forward.1} parent=11 // pred_check_branch
        %361 = sbr.rel (%p359) target = $region44
      $region43: #{tpmfb_forward.1} parent=11 // pred_region
        _
      $region44: #{tpmfb_forward.1} parent=11 // pred_fallthru
        _
      // Predicated region
      $region45: #{tpmfb_forward.1} parent=11 // pred_check
        %p362 = pneg %p234
      $region46: #{tpmfb_forward.1} parent=11 // pred_check_branch
        %364 = sbr.rel (%p362) target = $region48
      $region47: #{tpmfb_forward.1} parent=11 // pred_region
        _
      $region48: #{tpmfb_forward.1} parent=11 // pred_fallthru
        _
      // Predicated region
      $region49: #{tpmfb_forward.1} parent=11 // pred_check
        %p365 = pneg %p255
      $region50: #{tpmfb_forward.1} parent=11 // pred_check_branch
        %367 = sbr.rel (%p365) target = $region52
      $region51: #{tpmfb_forward.1} parent=11 // pred_region
        _
      $region52: #{tpmfb_forward.1} parent=11 // pred_fallthru
        _
      // Predicated region
      $region53: #{tpmfb_forward.1} parent=11 // pred_check
        %p368 = pneg %p276
      $region54: #{tpmfb_forward.1} parent=11 // pred_check_branch
        %370 = sbr.rel (%p368) target = $region56
      $region55: #{tpmfb_forward.1} parent=11 // pred_region
        _
      $region56: #{tpmfb_forward.1} parent=11 // pred_fallthru
        _
      // Predicated region
      $region57: #{tpmfb_forward.1} parent=11 // pred_check
        %p371 = pneg %p297
      $region58: #{tpmfb_forward.1} parent=11 // pred_check_branch
        %373 = sbr.rel (%p371) target = $region60
      $region59: #{tpmfb_forward.1} parent=11 // pred_region
        _
      $region60: #{tpmfb_forward.1} parent=11 // pred_fallthru
        _
    $region12: #{tpmfb_forward.1} parent=5 // pred_fallthru
      _
    %p374 = scmp.lt.s32.totalorder %s19, 2
    // Predicated region
    $region61: #{tpmfb_forward.1} parent=5 // pred_check
      %p375 = pneg %p374
    $region62: #{tpmfb_forward.1} parent=5 // pred_check_branch
      %377 = sbr.rel (%p375) target = $region64
    $region63: #{tpmfb_forward.1} parent=5 // pred_region
      // Predicated region
      $region65: #{tpmfb_forward.1} parent=63 // pred_check
        %p378 = pneg %p39
      $region66: #{tpmfb_forward.1} parent=63 // pred_check_branch
        %380 = sbr.rel (%p378) target = $region68
      $region67: #{tpmfb_forward.1} parent=63 // pred_region
        %p381 = scmp.lt.s32.totalorder %s19, 1
        %s382 = scalar_select %p381, %s19, 1
        %s383 = smul.addr %s382, 6
        %s384 = smul.addr %s383, 8
        %s385 = scalar_lea.vmem %s0, %s384
      $region68: #{tpmfb_forward.1} parent=63 // pred_fallthru
        _
    $region64: #{tpmfb_forward.1} parent=5 // pred_fallthru
      _
    %p386 = scmp.le.s32.totalorder 1, %s19
    %p387 = scmp.lt.s32.totalorder %s19, 3
    %p388 = pnand %p386, %p387
    %p389 = pneg %p388
    // Predicated region
    $region69: #{tpmfb_forward.1} parent=5 // pred_check
      _
    $region70: #{tpmfb_forward.1} parent=5 // pred_check_branch
      %391 = sbr.rel (%p388) target = $region72
    $region71: #{tpmfb_forward.1} parent=5 // pred_region
      %s392 = ssub.s32 %s19, 1
      %p393 = scmp.lt.s32.totalorder %s24, 1
      %s394 = scalar_select %p393, %s24, 1
      %s395 = smul.addr %s394, 6
      %s396 = smul.addr %s395, 8
      %s397 = scalar_lea.vmem %s0, %s396
      %p398 = pneg %p45
      %p399 = pneg %p42
      %p400 = pneg %p66
      %p401 = pneg %p63
      %p402 = pneg %p87
      %p403 = pneg %p84
      %p404 = pneg %p108
      %p405 = pneg %p105
      %p406 = pneg %p129
      %p407 = pneg %p126
      %p408 = pneg %p150
      %p409 = pneg %p147
      %p410 = pneg %p171
      %p411 = pneg %p168
      %p412 = pneg %p192
      %p413 = pneg %p189
      %p414 = pneg %p213
      %p415 = pneg %p210
      %p416 = pneg %p234
      %p417 = pneg %p231
      %p418 = pneg %p255
      %p419 = pneg %p252
      %p420 = pneg %p276
      %p421 = pneg %p273
      %p422 = pneg %p297
      %p423 = pneg %p294
      %p424 = pneg %p323
      %p425 = pneg %p320
      %p426 = scmp.lt.s32.totalorder %s24, 1
      %s427 = scalar_select %p426, %s24, 1
      %s428 = smul.addr %s427, 6
      %s429 = smul.addr %s428, 8
      %s430 = scalar_lea.vmem %s13, %s429
      %p431 = scmp.lt.s32.totalorder %s24, 1
      %s432 = scalar_select %p431, %s24, 1
      %s433 = smul.addr %s432, 6
      %s434 = smul.addr %s433, 8
      %s435 = scalar_lea.vmem %s0, %s434
      %p436 = scmp.lt.s32.totalorder %s24, 1
      %s437 = scalar_select %p436, %s24, 1
      %s438 = smul.addr %s437, 6
      %s439 = smul.addr %s438, 8
      %s440 = scalar_lea.vmem %s13, %s439
      %v441 = vld [vmem:[%s435] sm:$0xff]
      %v442 = vld [vmem:[%s435 + $0x8] sm:$0xff]
      %v443 = vld [vmem:[%s435 + $0x10] sm:$0xff]
      %v444 = vld [vmem:[%s435 + $0x18] sm:$0xff]
      %v445 = vld [vmem:[%s435 + $0x20] sm:$0xff]
      %v446 = vld [vmem:[%s435 + $0x28] sm:$0xff]
      %v447 = vld [vmem:[%s1] sm:$0xff]
      %v448 = vld [vmem:[%s1 + $0x8] sm:$0xff]
      %v449 = vld [vmem:[%s1 + $0x10] sm:$0xff]
      %v450 = vld [vmem:[%s1 + $0x18] sm:$0xff]
      %v451 = vld [vmem:[%s1 + $0x20] sm:$0xff]
      %v452 = vld [vmem:[%s1 + $0x28] sm:$0xff]
      %v453 = vld [vmem:[%s1 + $0x30] sm:$0xff]
      %v454 = vld [vmem:[%s1 + $0x38] sm:$0xff]
      %v455 = vld [vmem:[%s1 + $0x40] sm:$0xff]
      %v456 = vld [vmem:[%s1 + $0x48] sm:$0xff]
      %v457 = vld [vmem:[%s1 + $0x50] sm:$0xff]
      %v458 = vld [vmem:[%s1 + $0x58] sm:$0xff]
      %v459 = vld [vmem:[%s1 + $0x60] sm:$0xff]
      %v460 = vld [vmem:[%s1 + $0x68] sm:$0xff]
      %v461 = vld [vmem:[%s1 + $0x70] sm:$0xff]
      %v462 = vld [vmem:[%s1 + $0x78] sm:$0xff]
      %v463 = vld [vmem:[%s1 + $0x80] sm:$0xff]
      %v464 = vld [vmem:[%s1 + $0x88] sm:$0xff]
      %v465 = vld [vmem:[%s1 + $0x90] sm:$0xff]
      %v466 = vld [vmem:[%s1 + $0x98] sm:$0xff]
      %v467 = vld [vmem:[%s1 + $0xa0] sm:$0xff]
      %v468 = vld [vmem:[%s1 + $0xa8] sm:$0xff]
      %v469 = vld [vmem:[%s1 + $0xb0] sm:$0xff]
      %v470 = vld [vmem:[%s1 + $0xb8] sm:$0xff]
      %v471 = vld [vmem:[%s1 + $0xc0] sm:$0xff]
      %v472 = vld [vmem:[%s1 + $0xc8] sm:$0xff]
      %v473 = vld [vmem:[%s1 + $0xd0] sm:$0xff]
      %v474 = vld [vmem:[%s1 + $0xd8] sm:$0xff]
      %v475 = vld [vmem:[%s1 + $0xe0] sm:$0xff]
      %v476 = vld [vmem:[%s1 + $0xe8] sm:$0xff]
      %v477 = vld [vmem:[%s1 + $0xf0] sm:$0xff]
      %v478 = vld [vmem:[%s1 + $0xf8] sm:$0xff]
      %v479 = vld [vmem:[%s1 + $0x100] sm:$0xff]
      %v480 = vld [vmem:[%s1 + $0x108] sm:$0xff]
      %v481 = vld [vmem:[%s1 + $0x110] sm:$0xff]
      %v482 = vld [vmem:[%s1 + $0x118] sm:$0xff]
      %v483 = vld [vmem:[%s2] sm:$0x1]
      %v485 = vperm.slane %v483, 0
      %vm487 = vcmask 261120
      %v489 = vsel %vm487, %v443, 0
      %v492 = vsel %vm487, %v446, 0
      %494 = vmatpush.msra.mxu0 %v462
      %495 = vmatpush.msra.mxu0 %v461
      %496 = vmatpush.msra.mxu0 %v460
      %497 = vmatpush.msra.mxu0 %v459
      %498 = vmatpush.msra.mxu0 %v458
      %499 = vmatpush.msra.mxu0 %v457
      %500 = vmatpush.msra.mxu0 %v456
      %501 = vmatpush.msra.mxu0 %v455
      %502 = vmatpush.msra.mxu0 %v454
      %503 = vmatpush.msra.mxu0 %v453
      %504 = vmatpush.msra.mxu0 %v452
      %505 = vmatpush.msra.mxu0 %v451
      %506 = vmatpush.msra.mxu0 %v450
      %507 = vmatpush.msra.mxu0 %v449
      %508 = vmatpush.msra.mxu0 %v448
      %509 = vmatpush.msra.mxu0 %v447
      %510 = vmatmul.f32.gmra.mxu0 %v441
      %v511 = vpop.f32.mrf.mxu0
      %v512 = vadd.f32 %v485, %v511
      %513 = vmatmul.f32.gmra.mxu0 %v444
      %v514 = vpop.f32.mrf.mxu0
      %v515 = vadd.f32 %v485, %v514
      %516 = vdwg.mxu0
      %517 = vmatpush.msra.mxu0 %v478
      %518 = vmatpush.msra.mxu0 %v477
      %519 = vmatpush.msra.mxu0 %v476
      %520 = vmatpush.msra.mxu0 %v475
      %521 = vmatpush.msra.mxu0 %v474
      %522 = vmatpush.msra.mxu0 %v473
      %523 = vmatpush.msra.mxu0 %v472
      %524 = vmatpush.msra.mxu0 %v471
      %525 = vmatpush.msra.mxu0 %v470
      %526 = vmatpush.msra.mxu0 %v469
      %527 = vmatpush.msra.mxu0 %v468
      %528 = vmatpush.msra.mxu0 %v467
      %529 = vmatpush.msra.mxu0 %v466
      %530 = vmatpush.msra.mxu0 %v465
      %531 = vmatpush.msra.mxu0 %v464
      %532 = vmatpush.msra.mxu0 %v463
      %533 = vmatmul.f32.gmra.mxu0 %v442
      %v534 = vpop.f32.mrf.mxu0
      %v535 = vadd.f32 %v512, %v534
      %536 = vmatmul.f32.gmra.mxu0 %v445
      %v537 = vpop.f32.mrf.mxu0
      %v538 = vadd.f32 %v515, %v537
      %539 = vdwg.mxu0
      %540 = vmatpush.msra.mxu0 0.0
      %541 = vmatpush.msra.mxu0 0.0
      %542 = vmatpush.msra.mxu0 0.0
      %543 = vmatpush.msra.mxu0 0.0
      %544 = vmatpush.msra.mxu0 0.0
      %545 = vmatpush.msra.mxu0 0.0
      %546 = vmatpush.msra.mxu0 0.0
      %547 = vmatpush.msra.mxu0 0.0
      %548 = vmatpush.msra.mxu0 0.0
      %549 = vmatpush.msra.mxu0 0.0
      %550 = vmatpush.msra.mxu0 0.0
      %551 = vmatpush.msra.mxu0 0.0
      %552 = vmatpush.msra.mxu0 %v482
      %553 = vmatpush.msra.mxu0 %v481
      %554 = vmatpush.msra.mxu0 %v480
      %555 = vmatpush.msra.mxu0 %v479
      %556 = vmatmul.f32.gmra.mxu0 %v489
      %v557 = vpop.f32.mrf.mxu0
      %v558 = vadd.f32 %v535, %v557
      %559 = vmatmul.f32.gmra.mxu0 %v492
      %v560 = vpop.f32.mrf.mxu0
      %v561 = vadd.f32 %v538, %v560
      %562 = vdwg.mxu0
      %v563 = vmax.f32 %v558, 0.0
      %v564 = vmax.f32 %v561, 0.0
      %v566 = vsel %vm487, %v563, 0
      %v569 = vsel %vm487, %v564, 0
      %571 = vmatpush.xpose.msra.mxu0 0.0
      %572 = vmatpush.xpose.msra.mxu0 0.0
      %573 = vmatpush.xpose.msra.mxu0 0.0
      %574 = vmatpush.xpose.msra.mxu0 0.0
      %575 = vmatpush.xpose.msra.mxu0 0.0
      %576 = vmatpush.xpose.msra.mxu0 0.0
      %577 = vmatpush.xpose.msra.mxu0 0.0
      %578 = vmatpush.xpose.msra.mxu0 0.0
      %579 = vmatpush.xpose.msra.mxu0 0.0
      %580 = vmatpush.xpose.msra.mxu0 0.0
      %581 = vmatpush.xpose.msra.mxu0 0.0
      %582 = vmatpush.xpose.msra.mxu0 0.0
      %583 = vmatpush.xpose.msra.mxu0 0.0
      %584 = vmatpush.xpose.msra.mxu0 0.0
      %585 = vmatpush.xpose.msra.mxu0 %v569
      %586 = vmatpush.xpose.msra.mxu0 %v566
      %587 = vmatmul.f32.gmra.mxu0 %v566
      %v588 = vpop.f32.mrf.mxu0
      %v589 = vadd.f32 0.0, %v588
      %590 = vmatmul.f32.gmra.mxu0 %v569
      %v591 = vpop.f32.mrf.mxu0
      %v592 = vadd.f32 0.0, %v591
      %593 = vdwg.mxu0
      %v594 = vlaneseq
      %v595 = vshrl.u32 %v594, 7
      %v596 = vadd.s32 %v595, 8
      %v597 = vlaneseq
      %v598 = vand.u32 %v597, 127
      %vm599 = vcmp.eq.s32.totalorder %v595, %v598
      %vm600 = vcmp.eq.s32.totalorder %v596, %v598
      %v601 = vsel %vm599, 1, 0
      %v602 = vsel %vm600, 1, 0
      %v603 = vcvt.s32.f32 %v601
      %v604 = vcvt.s32.f32 %v602
      %v605 = vmul.f32 %v589, %v603
      %v606 = vmul.f32 %v592, %v604
      %vm607 = vcmask 130048
      %v608 = vsel %vm607, %v605, 0.0
      %v609 = vsel %vm607, %v606, 0.0
      %v610 = vadd.f32 %v608, %v609
      %v611 = vrot.slane %v610, 4
      %v612 = vadd.f32 %v610, %v611
      %v613 = vrot.slane %v612, 2
      %v614 = vadd.f32 %v612, %v613
      %v615 = vrot.slane %v614, 1
      %v616 = vadd.f32 %v614, %v615
      %v617 = vmul.f32 %v589, 2.0
      %v618 = vmul.f32 %v592, 2.0
      %v619 = vsub.f32 %v616, %v617
      %v620 = vsub.f32 %v616, %v618
      %622 = vset.pattern.permute.xlu0 0
      %623 = vperm.xlu0 %622, %v619
      %v624 = vpop.permute.xlu0 %623
      %627 = vset.pattern.permute.xlu0 0
      %628 = vperm.xlu0 %627, %v620
      %v629 = vpop.permute.xlu0 %628
      %vm631 = vcmp.gt.f32.partialorder %v624, %v619
      %vm632 = vcmp.gt.f32.partialorder %v629, %v620
      %v633 = vsel %vm631, 1, 0
      %v634 = vsel %vm632, 1, 0
      %v635 = vcvt.s32.f32 %v633
      %v636 = vcvt.s32.f32 %v634
      %v637 = vadd.f32 %v635, 0.0
      %v638 = vadd.f32 %v636, 0.0
      %639 = vset.pattern.permute.xlu0 1
      %640 = vperm.xlu0 %639, %v619
      %v641 = vpop.permute.xlu0 %640
      %643 = vset.pattern.permute.xlu0 1
      %644 = vperm.xlu0 %643, %v620
      %v645 = vpop.permute.xlu0 %644
      %vm647 = vcmp.gt.f32.partialorder %v641, %v619
      %vm648 = vcmp.gt.f32.partialorder %v645, %v620
      %v649 = vsel %vm647, 1, 0
      %v650 = vsel %vm648, 1, 0
      %v651 = vcvt.s32.f32 %v649
      %v652 = vcvt.s32.f32 %v650
      %v653 = vadd.f32 %v637, %v651
      %v654 = vadd.f32 %v638, %v652
      %655 = vset.pattern.permute.xlu0 2
      %656 = vperm.xlu0 %655, %v619
      %v657 = vpop.permute.xlu0 %656
      %659 = vset.pattern.permute.xlu0 2
      %660 = vperm.xlu0 %659, %v620
      %v661 = vpop.permute.xlu0 %660
      %vm663 = vcmp.gt.f32.partialorder %v657, %v619
      %vm664 = vcmp.gt.f32.partialorder %v661, %v620
      %v665 = vsel %vm663, 1, 0
      %v666 = vsel %vm664, 1, 0
      %v667 = vcvt.s32.f32 %v665
      %v668 = vcvt.s32.f32 %v666
      %v669 = vadd.f32 %v653, %v667
      %v670 = vadd.f32 %v654, %v668
      %671 = vset.pattern.permute.xlu0 3
      %672 = vperm.xlu0 %671, %v619
      %v673 = vpop.permute.xlu0 %672
      %675 = vset.pattern.permute.xlu0 3
      %676 = vperm.xlu0 %675, %v620
      %v677 = vpop.permute.xlu0 %676
      %vm679 = vcmp.gt.f32.partialorder %v673, %v619
      %vm680 = vcmp.gt.f32.partialorder %v677, %v620
      %v681 = vsel %vm679, 1, 0
      %v682 = vsel %vm680, 1, 0
      %v683 = vcvt.s32.f32 %v681
      %v684 = vcvt.s32.f32 %v682
      %v685 = vadd.f32 %v669, %v683
      %v686 = vadd.f32 %v670, %v684
      %687 = vset.pattern.permute.xlu0 4
      %688 = vperm.xlu0 %687, %v619
      %v689 = vpop.permute.xlu0 %688
      %691 = vset.pattern.permute.xlu0 4
      %692 = vperm.xlu0 %691, %v620
      %v693 = vpop.permute.xlu0 %692
      %vm695 = vcmp.gt.f32.partialorder %v689, %v619
      %vm696 = vcmp.gt.f32.partialorder %v693, %v620
      %v697 = vsel %vm695, 1, 0
      %v698 = vsel %vm696, 1, 0
      %v699 = vcvt.s32.f32 %v697
      %v700 = vcvt.s32.f32 %v698
      %v701 = vadd.f32 %v685, %v699
      %v702 = vadd.f32 %v686, %v700
      %703 = vset.pattern.permute.xlu0 5
      %704 = vperm.xlu0 %703, %v619
      %v705 = vpop.permute.xlu0 %704
      %707 = vset.pattern.permute.xlu0 5
      %708 = vperm.xlu0 %707, %v620
      %v709 = vpop.permute.xlu0 %708
      %vm711 = vcmp.gt.f32.partialorder %v705, %v619
      %vm712 = vcmp.gt.f32.partialorder %v709, %v620
      %v713 = vsel %vm711, 1, 0
      %v714 = vsel %vm712, 1, 0
      %v715 = vcvt.s32.f32 %v713
      %v716 = vcvt.s32.f32 %v714
      %v717 = vadd.f32 %v701, %v715
      %v718 = vadd.f32 %v702, %v716
      %719 = vset.pattern.permute.xlu0 6
      %720 = vperm.xlu0 %719, %v619
      %v721 = vpop.permute.xlu0 %720
      %723 = vset.pattern.permute.xlu0 6
      %724 = vperm.xlu0 %723, %v620
      %v725 = vpop.permute.xlu0 %724
      %vm727 = vcmp.gt.f32.partialorder %v721, %v619
      %vm728 = vcmp.gt.f32.partialorder %v725, %v620
      %v729 = vsel %vm727, 1, 0
      %v730 = vsel %vm728, 1, 0
      %v731 = vcvt.s32.f32 %v729
      %v732 = vcvt.s32.f32 %v730
      %v733 = vadd.f32 %v717, %v731
      %v734 = vadd.f32 %v718, %v732
      %735 = vset.pattern.permute.xlu0 7
      %736 = vperm.xlu0 %735, %v619
      %v737 = vpop.permute.xlu0 %736
      %739 = vset.pattern.permute.xlu0 7
      %740 = vperm.xlu0 %739, %v620
      %v741 = vpop.permute.xlu0 %740
      %vm743 = vcmp.gt.f32.partialorder %v737, %v619
      %vm744 = vcmp.gt.f32.partialorder %v741, %v620
      %v745 = vsel %vm743, 1, 0
      %v746 = vsel %vm744, 1, 0
      %v747 = vcvt.s32.f32 %v745
      %v748 = vcvt.s32.f32 %v746
      %v749 = vadd.f32 %v733, %v747
      %v750 = vadd.f32 %v734, %v748
      %751 = vset.pattern.permute.xlu0 8
      %752 = vperm.xlu0 %751, %v619
      %v753 = vpop.permute.xlu0 %752
      %755 = vset.pattern.permute.xlu0 8
      %756 = vperm.xlu0 %755, %v620
      %v757 = vpop.permute.xlu0 %756
      %vm759 = vcmp.gt.f32.partialorder %v753, %v619
      %vm760 = vcmp.gt.f32.partialorder %v757, %v620
      %v761 = vsel %vm759, 1, 0
      %v762 = vsel %vm760, 1, 0
      %v763 = vcvt.s32.f32 %v761
      %v764 = vcvt.s32.f32 %v762
      %v765 = vadd.f32 %v749, %v763
      %v766 = vadd.f32 %v750, %v764
      %767 = vset.pattern.permute.xlu0 9
      %768 = vperm.xlu0 %767, %v619
      %v769 = vpop.permute.xlu0 %768
      %771 = vset.pattern.permute.xlu0 9
      %772 = vperm.xlu0 %771, %v620
      %v773 = vpop.permute.xlu0 %772
      %vm775 = vcmp.gt.f32.partialorder %v769, %v619
      %vm776 = vcmp.gt.f32.partialorder %v773, %v620
      %v777 = vsel %vm775, 1, 0
      %v778 = vsel %vm776, 1, 0
      %v779 = vcvt.s32.f32 %v777
      %v780 = vcvt.s32.f32 %v778
      %v781 = vadd.f32 %v765, %v779
      %v782 = vadd.f32 %v766, %v780
      %783 = vset.pattern.permute.xlu0 10
      %784 = vperm.xlu0 %783, %v619
      %v785 = vpop.permute.xlu0 %784
      %787 = vset.pattern.permute.xlu0 10
      %788 = vperm.xlu0 %787, %v620
      %v789 = vpop.permute.xlu0 %788
      %vm791 = vcmp.gt.f32.partialorder %v785, %v619
      %vm792 = vcmp.gt.f32.partialorder %v789, %v620
      %v793 = vsel %vm791, 1, 0
      %v794 = vsel %vm792, 1, 0
      %v795 = vcvt.s32.f32 %v793
      %v796 = vcvt.s32.f32 %v794
      %v797 = vadd.f32 %v781, %v795
      %v798 = vadd.f32 %v782, %v796
      %799 = vset.pattern.permute.xlu0 11
      %800 = vperm.xlu0 %799, %v619
      %v801 = vpop.permute.xlu0 %800
      %803 = vset.pattern.permute.xlu0 11
      %804 = vperm.xlu0 %803, %v620
      %v805 = vpop.permute.xlu0 %804
      %vm807 = vcmp.gt.f32.partialorder %v801, %v619
      %vm808 = vcmp.gt.f32.partialorder %v805, %v620
      %v809 = vsel %vm807, 1, 0
      %v810 = vsel %vm808, 1, 0
      %v811 = vcvt.s32.f32 %v809
      %v812 = vcvt.s32.f32 %v810
      %v813 = vadd.f32 %v797, %v811
      %v814 = vadd.f32 %v798, %v812
      %815 = vset.pattern.permute.xlu0 12
      %816 = vperm.xlu0 %815, %v619
      %v817 = vpop.permute.xlu0 %816
      %819 = vset.pattern.permute.xlu0 12
      %820 = vperm.xlu0 %819, %v620
      %v821 = vpop.permute.xlu0 %820
      %vm823 = vcmp.gt.f32.partialorder %v817, %v619
      %vm824 = vcmp.gt.f32.partialorder %v821, %v620
      %v825 = vsel %vm823, 1, 0
      %v826 = vsel %vm824, 1, 0
      %v827 = vcvt.s32.f32 %v825
      %v828 = vcvt.s32.f32 %v826
      %v829 = vadd.f32 %v813, %v827
      %v830 = vadd.f32 %v814, %v828
      %831 = vset.pattern.permute.xlu0 13
      %832 = vperm.xlu0 %831, %v619
      %v833 = vpop.permute.xlu0 %832
      %835 = vset.pattern.permute.xlu0 13
      %836 = vperm.xlu0 %835, %v620
      %v837 = vpop.permute.xlu0 %836
      %vm839 = vcmp.gt.f32.partialorder %v833, %v619
      %vm840 = vcmp.gt.f32.partialorder %v837, %v620
      %v841 = vsel %vm839, 1, 0
      %v842 = vsel %vm840, 1, 0
      %v843 = vcvt.s32.f32 %v841
      %v844 = vcvt.s32.f32 %v842
      %v845 = vadd.f32 %v829, %v843
      %v846 = vadd.f32 %v830, %v844
      %847 = vset.pattern.permute.xlu0 14
      %848 = vperm.xlu0 %847, %v619
      %v849 = vpop.permute.xlu0 %848
      %851 = vset.pattern.permute.xlu0 14
      %852 = vperm.xlu0 %851, %v620
      %v853 = vpop.permute.xlu0 %852
      %vm855 = vcmp.gt.f32.partialorder %v849, %v619
      %vm856 = vcmp.gt.f32.partialorder %v853, %v620
      %v857 = vsel %vm855, 1, 0
      %v858 = vsel %vm856, 1, 0
      %v859 = vcvt.s32.f32 %v857
      %v860 = vcvt.s32.f32 %v858
      %v861 = vadd.f32 %v845, %v859
      %v862 = vadd.f32 %v846, %v860
      %863 = vset.pattern.permute.xlu0 15
      %864 = vperm.xlu0 %863, %v619
      %v865 = vpop.permute.xlu0 %864
      %867 = vset.pattern.permute.xlu0 15
      %868 = vperm.xlu0 %867, %v620
      %v869 = vpop.permute.xlu0 %868
      %vm871 = vcmp.gt.f32.partialorder %v865, %v619
      %vm872 = vcmp.gt.f32.partialorder %v869, %v620
      %v873 = vsel %vm871, 1, 0
      %v874 = vsel %vm872, 1, 0
      %v875 = vcvt.s32.f32 %v873
      %v876 = vcvt.s32.f32 %v874
      %v877 = vadd.f32 %v861, %v875
      %v878 = vadd.f32 %v862, %v876
      %vm879 = vcmp.lt.f32.partialorder %v877, 7.0
      %vm880 = vcmp.lt.f32.partialorder %v878, 7.0
      %v881 = vld [vmem:[%s3] sm:$0xff]
      %v882 = vld [vmem:[%s3 + $0x8] sm:$0xff]
      %v883 = vld [vmem:[%s3 + $0x10] sm:$0xff]
      %v884 = vld [vmem:[%s3 + $0x18] sm:$0xff]
      %v885 = vld [vmem:[%s4] sm:$0x1]
      %v886 = vld [vmem:[%s5] sm:$0x1]
      %887 = vmatpush.msra.mxu0 0.0
      %888 = vmatpush.msra.mxu0 0.0
      %889 = vmatpush.msra.mxu0 0.0
      %890 = vmatpush.msra.mxu0 0.0
      %891 = vmatpush.msra.mxu0 0.0
      %892 = vmatpush.msra.mxu0 0.0
      %893 = vmatpush.msra.mxu0 0.0
      %894 = vmatpush.msra.mxu0 0.0
      %895 = vmatpush.msra.mxu0 0.0
      %896 = vmatpush.msra.mxu0 0.0
      %897 = vmatpush.msra.mxu0 0.0
      %898 = vmatpush.msra.mxu0 0.0
      %899 = vmatpush.msra.mxu0 %v884
      %900 = vmatpush.msra.mxu0 %v883
      %901 = vmatpush.msra.mxu0 %v882
      %902 = vmatpush.msra.mxu0 %v881
      %903 = vmatmul.f32.gmra.mxu0 %v566
      %v904 = vpop.f32.mrf.mxu0
      %v905 = vadd.f32 0.0, %v904
      %906 = vmatmul.f32.gmra.mxu0 %v569
      %v907 = vpop.f32.mrf.mxu0
      %v908 = vadd.f32 0.0, %v907
      %909 = vdwg.mxu0
      %v911 = vperm.slane %v885, 0
      %v913 = vmul.f32 %v905, %v911
      %v914 = vmul.f32 %v908, %v911
      %v915 = vsel %vm487, %v913, 0.0
      %916 = vadd.xlane.f32.xlu0 %v915
      %v917 = vpop.xlane.xlu0 %916
      %v918 = vsel %vm487, %v914, 0.0
      %919 = vadd.xlane.f32.xlu0 %v918
      %v920 = vpop.xlane.xlu0 %919
      %v922 = vsel %vm487, %v886, 0
      %v925 = vsel %vm487, %v905, 0
      %v928 = vsel %vm487, %v908, 0
      %930 = vmatpush.xpose.msra.mxu0 0.0
      %931 = vmatpush.xpose.msra.mxu0 0.0
      %932 = vmatpush.xpose.msra.mxu0 0.0
      %933 = vmatpush.xpose.msra.mxu0 0.0
      %934 = vmatpush.xpose.msra.mxu0 0.0
      %935 = vmatpush.xpose.msra.mxu0 0.0
      %936 = vmatpush.xpose.msra.mxu0 0.0
      %937 = vmatpush.xpose.msra.mxu0 0.0
      %938 = vmatpush.xpose.msra.mxu0 0.0
      %939 = vmatpush.xpose.msra.mxu0 0.0
      %940 = vmatpush.xpose.msra.mxu0 0.0
      %941 = vmatpush.xpose.msra.mxu0 0.0
      %942 = vmatpush.xpose.msra.mxu0 0.0
      %943 = vmatpush.xpose.msra.mxu0 0.0
      %944 = vmatpush.xpose.msra.mxu0 %v928
      %945 = vmatpush.xpose.msra.mxu0 %v925
      %946 = vmatmul.f32.gmra.mxu0 %v922
      %v947 = vpop.f32.mrf.mxu0
      %v948 = vadd.f32 0.0, %v947
      %949 = vdwg.mxu0
      %v950 = vperm.slane %v948, 0
      %v951 = vadd.f32 %v917, %v950
      %v952 = vadd.f32 %v920, %v950
      %vm953 = vcmp.gt.f32.partialorder %v951, 0.0
      %vm954 = vcmp.gt.f32.partialorder %v952, 0.0
      %v955 = vmul.f32 %v951, 0.2
      %v956 = vmul.f32 %v952, 0.2
      %v957 = vsel %vm953, %v951, %v955
      %v958 = vsel %vm954, %v952, %v956
      %v959 = vsel %vm879, %v957, -9e+15
      %v960 = vsel %vm880, %v958, -9e+15
      %v961 = vsel %vm607, %v959, -inf
      %962 = vmax.xlane.f32.xlu0 %v961
      %v963 = vpop.xlane.xlu0 %962
      %v964 = vsel %vm607, %v960, -inf
      %965 = vmax.xlane.f32.xlu0 %v964
      %v966 = vpop.xlane.xlu0 %965
      %v967 = vsub.f32 %v959, %v963
      %v968 = vsub.f32 %v960, %v966
      %v969 = vmul.f32 %v967, 1.442695
      %v970 = vpow.pop %v969
      %v971 = vmul.f32 %v968, 1.442695
      %v972 = vpow.pop %v971
      %v973 = vsel %vm607, %v970, 0.0
      %974 = vadd.xlane.f32.xlu0 %v973
      %v975 = vpop.xlane.xlu0 %974
      %v976 = vsel %vm607, %v972, 0.0
      %977 = vadd.xlane.f32.xlu0 %v976
      %v978 = vpop.xlane.xlu0 %977
      %v979 = vrcp.pop %v975
      %v980 = vmul.f32 %v975, %v979
      %v981 = vsub.f32 1.0, %v980
      %v982 = vmul.f32 %v979, %v981
      %v983 = vadd.f32 %v979, %v982
      %vm984 = vweird.f32 %v975
      %vm985 = vweird.f32 %v979
      %vm986 = vmor %vm984, %vm985
      %v987 = vsel %vm986, %v979, %v983
      %v988 = vand.u32 2147483647, %v975
      %vm989 = vcmp.eq.f32.partialorder %v988, 8.507059e+37
      %v990 = vand.u32 %v975, 2147483648
      %v991 = vor.u32 1.1754944e-38, %v990
      %v992 = vsel %vm989, %v991, %v987
      %v993 = vmul.f32 %v970, %v992
      %v994 = vrcp.pop %v978
      %v995 = vmul.f32 %v978, %v994
      %v996 = vsub.f32 1.0, %v995
      %v997 = vmul.f32 %v994, %v996
      %v998 = vadd.f32 %v994, %v997
      %vm999 = vweird.f32 %v978
      %vm1000 = vweird.f32 %v994
      %vm1001 = vmor %vm999, %vm1000
      %v1002 = vsel %vm1001, %v994, %v998
      %v1003 = vand.u32 2147483647, %v978
      %vm1004 = vcmp.eq.f32.partialorder %v1003, 8.507059e+37
      %v1005 = vand.u32 %v978, 2147483648
      %v1006 = vor.u32 1.1754944e-38, %v1005
      %v1007 = vsel %vm1004, %v1006, %v1002
      %v1008 = vmul.f32 %v972, %v1007
      %v1010 = vsel %vm607, %v993, 0
      %v1013 = vsel %vm607, %v1008, 0
      %1015 = vmatpush.msra.mxu0 0.0
      %1016 = vmatpush.msra.mxu0 0.0
      %1017 = vmatpush.msra.mxu0 0.0
      %1018 = vmatpush.msra.mxu0 0.0
      %1019 = vmatpush.msra.mxu0 0.0
      %1020 = vmatpush.msra.mxu0 0.0
      %1021 = vmatpush.msra.mxu0 0.0
      %1022 = vmatpush.msra.mxu0 0.0
      %1023 = vmatpush.msra.mxu0 0.0
      %1024 = vmatpush.msra.mxu0 0.0
      %1025 = vmatpush.msra.mxu0 0.0
      %1026 = vmatpush.msra.mxu0 0.0
      %1027 = vmatpush.msra.mxu0 0.0
      %1028 = vmatpush.msra.mxu0 0.0
      %1029 = vmatpush.msra.mxu0 %v908
      %1030 = vmatpush.msra.mxu0 %v905
      %1031 = vmatmul.f32.gmra.mxu0 %v1010
      %v1032 = vpop.f32.mrf.mxu0
      %v1033 = vadd.f32 0.0, %v1032
      %1034 = vmatmul.f32.gmra.mxu0 %v1013
      %v1035 = vpop.f32.mrf.mxu0
      %v1036 = vadd.f32 0.0, %v1035
      %1037 = vdwg.mxu0
      %vm1038 = vcmp.gt.f32.partialorder %v1033, 0.0
      %vm1039 = vcmp.gt.f32.partialorder %v1036, 0.0
      %v1040 = vmin.f32 %v1033, 0.0
      %v1041 = vmin.f32 %v1036, 0.0
      %v1042 = vmul.f32 %v1040, 1.442695
      %v1043 = vpow.pop %v1042
      %v1044 = vmul.f32 %v1041, 1.442695
      %v1045 = vpow.pop %v1044
      %v1046 = vsub.f32 %v1043, 1.0
      %v1047 = vsub.f32 %v1045, 1.0
      %v1048 = vsel %vm1038, %v1033, %v1046
      %v1049 = vsel %vm1039, %v1036, %v1047
      %v1050 = vld [vmem:[%s6] sm:$0xff]
      %v1051 = vld [vmem:[%s6 + $0x8] sm:$0xff]
      %v1052 = vld [vmem:[%s6 + $0x10] sm:$0xff]
      %v1053 = vld [vmem:[%s6 + $0x18] sm:$0xff]
      %v1054 = vld [vmem:[%s7] sm:$0x1]
      %v1055 = vld [vmem:[%s8] sm:$0x1]
      %v1057 = vsel %vm487, %v1048, 0
      %v1060 = vsel %vm487, %v1049, 0
      %1062 = vmatpush.msra.mxu0 0.0
      %1063 = vmatpush.msra.mxu0 0.0
      %1064 = vmatpush.msra.mxu0 0.0
      %1065 = vmatpush.msra.mxu0 0.0
      %1066 = vmatpush.msra.mxu0 0.0
      %1067 = vmatpush.msra.mxu0 0.0
      %1068 = vmatpush.msra.mxu0 0.0
      %1069 = vmatpush.msra.mxu0 0.0
      %1070 = vmatpush.msra.mxu0 0.0
      %1071 = vmatpush.msra.mxu0 0.0
      %1072 = vmatpush.msra.mxu0 0.0
      %1073 = vmatpush.msra.mxu0 0.0
      %1074 = vmatpush.msra.mxu0 %v1053
      %1075 = vmatpush.msra.mxu0 %v1052
      %1076 = vmatpush.msra.mxu0 %v1051
      %1077 = vmatpush.msra.mxu0 %v1050
      %1078 = vmatmul.f32.gmra.mxu0 %v1057
      %v1079 = vpop.f32.mrf.mxu0
      %v1080 = vadd.f32 0.0, %v1079
      %1081 = vmatmul.f32.gmra.mxu0 %v1060
      %v1082 = vpop.f32.mrf.mxu0
      %v1083 = vadd.f32 0.0, %v1082
      %1084 = vdwg.mxu0
      %v1086 = vperm.slane %v1054, 0
      %v1088 = vmul.f32 %v1080, %v1086
      %v1089 = vmul.f32 %v1083, %v1086
      %v1090 = vsel %vm487, %v1088, 0.0
      %1091 = vadd.xlane.f32.xlu0 %v1090
      %v1092 = vpop.xlane.xlu0 %1091
      %v1093 = vsel %vm487, %v1089, 0.0
      %1094 = vadd.xlane.f32.xlu0 %v1093
      %v1095 = vpop.xlane.xlu0 %1094
      %v1097 = vsel %vm487, %v1055, 0
      %v1100 = vsel %vm487, %v1080, 0
      %v1103 = vsel %vm487, %v1083, 0
      %1105 = vmatpush.xpose.msra.mxu0 0.0
      %1106 = vmatpush.xpose.msra.mxu0 0.0
      %1107 = vmatpush.xpose.msra.mxu0 0.0
      %1108 = vmatpush.xpose.msra.mxu0 0.0
      %1109 = vmatpush.xpose.msra.mxu0 0.0
      %1110 = vmatpush.xpose.msra.mxu0 0.0
      %1111 = vmatpush.xpose.msra.mxu0 0.0
      %1112 = vmatpush.xpose.msra.mxu0 0.0
      %1113 = vmatpush.xpose.msra.mxu0 0.0
      %1114 = vmatpush.xpose.msra.mxu0 0.0
      %1115 = vmatpush.xpose.msra.mxu0 0.0
      %1116 = vmatpush.xpose.msra.mxu0 0.0
      %1117 = vmatpush.xpose.msra.mxu0 0.0
      %1118 = vmatpush.xpose.msra.mxu0 0.0
      %1119 = vmatpush.xpose.msra.mxu0 %v1103
      %1120 = vmatpush.xpose.msra.mxu0 %v1100
      %1121 = vmatmul.f32.gmra.mxu0 %v1097
      %v1122 = vpop.f32.mrf.mxu0
      %v1123 = vadd.f32 0.0, %v1122
      %1124 = vdwg.mxu0
      %v1125 = vperm.slane %v1123, 0
      %v1126 = vadd.f32 %v1092, %v1125
      %v1127 = vadd.f32 %v1095, %v1125
      %vm1128 = vcmp.gt.f32.partialorder %v1126, 0.0
      %vm1129 = vcmp.gt.f32.partialorder %v1127, 0.0
      %v1130 = vmul.f32 %v1126, 0.2
      %v1131 = vmul.f32 %v1127, 0.2
      %v1132 = vsel %vm1128, %v1126, %v1130
      %v1133 = vsel %vm1129, %v1127, %v1131
      %v1134 = vsel %vm879, %v1132, -9e+15
      %v1135 = vsel %vm880, %v1133, -9e+15
      %v1136 = vsel %vm607, %v1134, -inf
      %1137 = vmax.xlane.f32.xlu0 %v1136
      %v1138 = vpop.xlane.xlu0 %1137
      %v1139 = vsel %vm607, %v1135, -inf
      %1140 = vmax.xlane.f32.xlu0 %v1139
      %v1141 = vpop.xlane.xlu0 %1140
      %v1142 = vsub.f32 %v1134, %v1138
      %v1143 = vsub.f32 %v1135, %v1141
      %v1144 = vmul.f32 %v1142, 1.442695
      %v1145 = vpow.pop %v1144
      %v1146 = vmul.f32 %v1143, 1.442695
      %v1147 = vpow.pop %v1146
      %v1148 = vsel %vm607, %v1145, 0.0
      %1149 = vadd.xlane.f32.xlu0 %v1148
      %v1150 = vpop.xlane.xlu0 %1149
      %v1151 = vsel %vm607, %v1147, 0.0
      %1152 = vadd.xlane.f32.xlu0 %v1151
      %v1153 = vpop.xlane.xlu0 %1152
      %v1154 = vrcp.pop %v1150
      %v1155 = vmul.f32 %v1150, %v1154
      %v1156 = vsub.f32 1.0, %v1155
      %v1157 = vmul.f32 %v1154, %v1156
      %v1158 = vadd.f32 %v1154, %v1157
      %vm1159 = vweird.f32 %v1150
      %vm1160 = vweird.f32 %v1154
      %vm1161 = vmor %vm1159, %vm1160
      %v1162 = vsel %vm1161, %v1154, %v1158
      %v1163 = vand.u32 2147483647, %v1150
      %vm1164 = vcmp.eq.f32.partialorder %v1163, 8.507059e+37
      %v1165 = vand.u32 %v1150, 2147483648
      %v1166 = vor.u32 1.1754944e-38, %v1165
      %v1167 = vsel %vm1164, %v1166, %v1162
      %v1168 = vmul.f32 %v1145, %v1167
      %v1169 = vrcp.pop %v1153
      %v1170 = vmul.f32 %v1153, %v1169
      %v1171 = vsub.f32 1.0, %v1170
      %v1172 = vmul.f32 %v1169, %v1171
      %v1173 = vadd.f32 %v1169, %v1172
      %vm1174 = vweird.f32 %v1153
      %vm1175 = vweird.f32 %v1169
      %vm1176 = vmor %vm1174, %vm1175
      %v1177 = vsel %vm1176, %v1169, %v1173
      %v1178 = vand.u32 2147483647, %v1153
      %vm1179 = vcmp.eq.f32.partialorder %v1178, 8.507059e+37
      %v1180 = vand.u32 %v1153, 2147483648
      %v1181 = vor.u32 1.1754944e-38, %v1180
      %v1182 = vsel %vm1179, %v1181, %v1177
      %v1183 = vmul.f32 %v1147, %v1182
      %v1185 = vsel %vm607, %v1168, 0
      %v1188 = vsel %vm607, %v1183, 0
      %1190 = vmatpush.msra.mxu0 0.0
      %1191 = vmatpush.msra.mxu0 0.0
      %1192 = vmatpush.msra.mxu0 0.0
      %1193 = vmatpush.msra.mxu0 0.0
      %1194 = vmatpush.msra.mxu0 0.0
      %1195 = vmatpush.msra.mxu0 0.0
      %1196 = vmatpush.msra.mxu0 0.0
      %1197 = vmatpush.msra.mxu0 0.0
      %1198 = vmatpush.msra.mxu0 0.0
      %1199 = vmatpush.msra.mxu0 0.0
      %1200 = vmatpush.msra.mxu0 0.0
      %1201 = vmatpush.msra.mxu0 0.0
      %1202 = vmatpush.msra.mxu0 0.0
      %1203 = vmatpush.msra.mxu0 0.0
      %1204 = vmatpush.msra.mxu0 %v1083
      %1205 = vmatpush.msra.mxu0 %v1080
      %1206 = vmatmul.f32.gmra.mxu0 %v1185
      %v1207 = vpop.f32.mrf.mxu0
      %v1208 = vadd.f32 0.0, %v1207
      %1209 = vmatmul.f32.gmra.mxu0 %v1188
      %v1210 = vpop.f32.mrf.mxu0
      %v1211 = vadd.f32 0.0, %v1210
      %1212 = vdwg.mxu0
      %vm1213 = vcmp.gt.f32.partialorder %v1208, 0.0
      %vm1214 = vcmp.gt.f32.partialorder %v1211, 0.0
      %v1215 = vmin.f32 %v1208, 0.0
      %v1216 = vmin.f32 %v1211, 0.0
      %v1217 = vmul.f32 %v1215, 1.442695
      %v1218 = vpow.pop %v1217
      %v1219 = vmul.f32 %v1216, 1.442695
      %v1220 = vpow.pop %v1219
      %v1221 = vsub.f32 %v1218, 1.0
      %v1222 = vsub.f32 %v1220, 1.0
      %v1223 = vsel %vm1213, %v1208, %v1221
      %v1224 = vsel %vm1214, %v1211, %v1222
      %v1225 = vld [vmem:[%s9] sm:$0xff]
      %v1226 = vld [vmem:[%s9 + $0x8] sm:$0xff]
      %v1227 = vld [vmem:[%s9 + $0x10] sm:$0xff]
      %v1228 = vld [vmem:[%s9 + $0x18] sm:$0xff]
      %v1229 = vld [vmem:[%s9 + $0x20] sm:$0xff]
      %v1230 = vld [vmem:[%s9 + $0x28] sm:$0xff]
      %v1231 = vld [vmem:[%s9 + $0x30] sm:$0xff]
      %v1232 = vld [vmem:[%s9 + $0x38] sm:$0xff]
      %v1233 = vld [vmem:[%s9 + $0x40] sm:$0xff]
      %v1234 = vld [vmem:[%s9 + $0x48] sm:$0xff]
      %v1235 = vld [vmem:[%s9 + $0x50] sm:$0xff]
      %v1236 = vld [vmem:[%s9 + $0x58] sm:$0xff]
      %v1237 = vld [vmem:[%s10] sm:$0x7]
      %v1239 = vperm.slane %v1237, 0
      %v1240 = vperm.slane %v1237, 1
      %v1241 = vperm.slane %v1237, 2
      %v1246 = vsel %vm487, %v1223, 0
      %v1249 = vsel %vm487, %v1224, 0
      %1251 = vmatpush.msra.mxu0 0.0
      %1252 = vmatpush.msra.mxu0 0.0
      %1253 = vmatpush.msra.mxu0 0.0
      %1254 = vmatpush.msra.mxu0 0.0
      %1255 = vmatpush.msra.mxu0 0.0
      %1256 = vmatpush.msra.mxu0 0.0
      %1257 = vmatpush.msra.mxu0 0.0
      %1258 = vmatpush.msra.mxu0 0.0
      %1259 = vmatpush.msra.mxu0 0.0
      %1260 = vmatpush.msra.mxu0 0.0
      %1261 = vmatpush.msra.mxu0 0.0
      %1262 = vmatpush.msra.mxu0 0.0
      %1263 = vmatpush.msra.mxu0 %v1234
      %1264 = vmatpush.msra.mxu0 %v1231
      %1265 = vmatpush.msra.mxu0 %v1228
      %1266 = vmatpush.msra.mxu0 %v1225
      %1267 = vmatmul.f32.gmra.mxu0 %v1246
      %v1268 = vpop.f32.mrf.mxu0
      %v1269 = vadd.f32 %v1239, %v1268
      %1270 = vmatmul.f32.gmra.mxu0 %v1249
      %v1271 = vpop.f32.mrf.mxu0
      %v1272 = vadd.f32 %v1239, %v1271
      %1273 = vdwg.mxu0
      %1274 = vmatpush.msra.mxu0 0.0
      %1275 = vmatpush.msra.mxu0 0.0
      %1276 = vmatpush.msra.mxu0 0.0
      %1277 = vmatpush.msra.mxu0 0.0
      %1278 = vmatpush.msra.mxu0 0.0
      %1279 = vmatpush.msra.mxu0 0.0
      %1280 = vmatpush.msra.mxu0 0.0
      %1281 = vmatpush.msra.mxu0 0.0
      %1282 = vmatpush.msra.mxu0 0.0
      %1283 = vmatpush.msra.mxu0 0.0
      %1284 = vmatpush.msra.mxu0 0.0
      %1285 = vmatpush.msra.mxu0 0.0
      %1286 = vmatpush.msra.mxu0 %v1235
      %1287 = vmatpush.msra.mxu0 %v1232
      %1288 = vmatpush.msra.mxu0 %v1229
      %1289 = vmatpush.msra.mxu0 %v1226
      %1290 = vmatmul.f32.gmra.mxu0 %v1246
      %v1291 = vpop.f32.mrf.mxu0
      %v1292 = vadd.f32 %v1240, %v1291
      %1293 = vmatmul.f32.gmra.mxu0 %v1249
      %v1294 = vpop.f32.mrf.mxu0
      %v1295 = vadd.f32 %v1240, %v1294
      %1296 = vdwg.mxu0
      %1297 = vmatpush.msra.mxu0 0.0
      %1298 = vmatpush.msra.mxu0 0.0
      %1299 = vmatpush.msra.mxu0 0.0
      %1300 = vmatpush.msra.mxu0 0.0
      %1301 = vmatpush.msra.mxu0 0.0
      %1302 = vmatpush.msra.mxu0 0.0
      %1303 = vmatpush.msra.mxu0 0.0
      %1304 = vmatpush.msra.mxu0 0.0
      %1305 = vmatpush.msra.mxu0 0.0
      %1306 = vmatpush.msra.mxu0 0.0
      %1307 = vmatpush.msra.mxu0 0.0
      %1308 = vmatpush.msra.mxu0 0.0
      %1309 = vmatpush.msra.mxu0 %v1236
      %1310 = vmatpush.msra.mxu0 %v1233
      %1311 = vmatpush.msra.mxu0 %v1230
      %1312 = vmatpush.msra.mxu0 %v1227
      %1313 = vmatmul.f32.gmra.mxu0 %v1246
      %v1314 = vpop.f32.mrf.mxu0
      %v1315 = vadd.f32 %v1241, %v1314
      %1316 = vmatmul.f32.gmra.mxu0 %v1249
      %v1317 = vpop.f32.mrf.mxu0
      %v1318 = vadd.f32 %v1241, %v1317
      %1319 = vdwg.mxu0
      %v1320 = vadd.f32 %v1269, %v441
      %v1321 = vadd.f32 %v1292, %v442
      %v1322 = vadd.f32 %v1315, %v443
      %v1323 = vadd.f32 %v1272, %v444
      %v1324 = vadd.f32 %v1295, %v445
      %v1325 = vadd.f32 %v1318, %v446
      %v1326 = vmax.f32 %v1320, 0.0
      %v1327 = vmax.f32 %v1321, 0.0
      %v1328 = vmax.f32 %v1322, 0.0
      %v1329 = vmax.f32 %v1323, 0.0
      %v1330 = vmax.f32 %v1324, 0.0
      %v1331 = vmax.f32 %v1325, 0.0
      %v1332 = vld [vmem:[%s11] sm:$0xff]
      %v1333 = vld [vmem:[%s11 + $0x8] sm:$0xff]
      %v1334 = vld [vmem:[%s11 + $0x10] sm:$0xff]
      %v1335 = vld [vmem:[%s11 + $0x18] sm:$0xff]
      %v1336 = vld [vmem:[%s11 + $0x20] sm:$0xff]
      %v1337 = vld [vmem:[%s11 + $0x28] sm:$0xff]
      %v1338 = vld [vmem:[%s11 + $0x30] sm:$0xff]
      %v1339 = vld [vmem:[%s11 + $0x38] sm:$0xff]
      %v1340 = vld [vmem:[%s11 + $0x40] sm:$0xff]
      %v1341 = vld [vmem:[%s11 + $0x48] sm:$0xff]
      %v1342 = vld [vmem:[%s11 + $0x50] sm:$0xff]
      %v1343 = vld [vmem:[%s11 + $0x58] sm:$0xff]
      %v1344 = vld [vmem:[%s11 + $0x60] sm:$0xff]
      %v1345 = vld [vmem:[%s11 + $0x68] sm:$0xff]
      %v1346 = vld [vmem:[%s11 + $0x70] sm:$0xff]
      %v1347 = vld [vmem:[%s11 + $0x78] sm:$0xff]
      %v1348 = vld [vmem:[%s11 + $0x80] sm:$0xff]
      %v1349 = vld [vmem:[%s11 + $0x88] sm:$0xff]
      %v1350 = vld [vmem:[%s11 + $0x90] sm:$0xff]
      %v1351 = vld [vmem:[%s11 + $0x98] sm:$0xff]
      %v1352 = vld [vmem:[%s11 + $0xa0] sm:$0xff]
      %v1353 = vld [vmem:[%s11 + $0xa8] sm:$0xff]
      %v1354 = vld [vmem:[%s11 + $0xb0] sm:$0xff]
      %v1355 = vld [vmem:[%s11 + $0xb8] sm:$0xff]
      %v1356 = vld [vmem:[%s11 + $0xc0] sm:$0xff]
      %v1357 = vld [vmem:[%s11 + $0xc8] sm:$0xff]
      %v1358 = vld [vmem:[%s11 + $0xd0] sm:$0xff]
      %v1359 = vld [vmem:[%s11 + $0xd8] sm:$0xff]
      %v1360 = vld [vmem:[%s11 + $0xe0] sm:$0xff]
      %v1361 = vld [vmem:[%s11 + $0xe8] sm:$0xff]
      %v1362 = vld [vmem:[%s11 + $0xf0] sm:$0xff]
      %v1363 = vld [vmem:[%s11 + $0xf8] sm:$0xff]
      %v1364 = vld [vmem:[%s11 + $0x100] sm:$0xff]
      %v1365 = vld [vmem:[%s11 + $0x108] sm:$0xff]
      %v1366 = vld [vmem:[%s11 + $0x110] sm:$0xff]
      %v1367 = vld [vmem:[%s11 + $0x118] sm:$0xff]
      %v1368 = vld [vmem:[%s11 + $0x120] sm:$0xff]
      %v1369 = vld [vmem:[%s11 + $0x128] sm:$0xff]
      %v1370 = vld [vmem:[%s11 + $0x130] sm:$0xff]
      %v1371 = vld [vmem:[%s11 + $0x138] sm:$0xff]
      %v1372 = vld [vmem:[%s11 + $0x140] sm:$0xff]
      %v1373 = vld [vmem:[%s11 + $0x148] sm:$0xff]
      %v1374 = vld [vmem:[%s11 + $0x150] sm:$0xff]
      %v1375 = vld [vmem:[%s11 + $0x158] sm:$0xff]
      %v1376 = vld [vmem:[%s11 + $0x160] sm:$0xff]
      %v1377 = vld [vmem:[%s11 + $0x168] sm:$0xff]
      %v1378 = vld [vmem:[%s11 + $0x170] sm:$0xff]
      %v1379 = vld [vmem:[%s11 + $0x178] sm:$0xff]
      %v1380 = vld [vmem:[%s11 + $0x180] sm:$0xff]
      %v1381 = vld [vmem:[%s11 + $0x188] sm:$0xff]
      %v1382 = vld [vmem:[%s11 + $0x190] sm:$0xff]
      %v1383 = vld [vmem:[%s11 + $0x198] sm:$0xff]
      %v1384 = vld [vmem:[%s11 + $0x1a0] sm:$0xff]
      %v1385 = vld [vmem:[%s11 + $0x1a8] sm:$0xff]
      %v1386 = vld [vmem:[%s11 + $0x1b0] sm:$0xff]
      %v1387 = vld [vmem:[%s11 + $0x1b8] sm:$0xff]
      %v1388 = vld [vmem:[%s11 + $0x1c0] sm:$0xff]
      %v1389 = vld [vmem:[%s11 + $0x1c8] sm:$0xff]
      %v1390 = vld [vmem:[%s11 + $0x1d0] sm:$0xff]
      %v1391 = vld [vmem:[%s11 + $0x1d8] sm:$0xff]
      %v1392 = vld [vmem:[%s11 + $0x1e0] sm:$0xff]
      %v1393 = vld [vmem:[%s11 + $0x1e8] sm:$0xff]
      %v1394 = vld [vmem:[%s11 + $0x1f0] sm:$0xff]
      %v1395 = vld [vmem:[%s11 + $0x1f8] sm:$0xff]
      %v1396 = vld [vmem:[%s11 + $0x200] sm:$0xff]
      %v1397 = vld [vmem:[%s11 + $0x208] sm:$0xff]
      %v1398 = vld [vmem:[%s11 + $0x210] sm:$0xff]
      %v1399 = vld [vmem:[%s11 + $0x218] sm:$0xff]
      %v1400 = vld [vmem:[%s11 + $0x220] sm:$0xff]
      %v1401 = vld [vmem:[%s11 + $0x228] sm:$0xff]
      %v1402 = vld [vmem:[%s11 + $0x230] sm:$0xff]
      %v1403 = vld [vmem:[%s11 + $0x238] sm:$0xff]
      %v1404 = vld [vmem:[%s11 + $0x240] sm:$0xff]
      %v1405 = vld [vmem:[%s11 + $0x248] sm:$0xff]
      %v1406 = vld [vmem:[%s11 + $0x250] sm:$0xff]
      %v1407 = vld [vmem:[%s11 + $0x258] sm:$0xff]
      %v1408 = vld [vmem:[%s11 + $0x260] sm:$0xff]
      %v1409 = vld [vmem:[%s11 + $0x268] sm:$0xff]
      %v1410 = vld [vmem:[%s11 + $0x270] sm:$0xff]
      %v1411 = vld [vmem:[%s11 + $0x278] sm:$0xff]
      %v1412 = vld [vmem:[%s11 + $0x280] sm:$0xff]
      %v1413 = vld [vmem:[%s11 + $0x288] sm:$0xff]
      %v1414 = vld [vmem:[%s11 + $0x290] sm:$0xff]
      %v1415 = vld [vmem:[%s11 + $0x298] sm:$0xff]
      %v1416 = vld [vmem:[%s11 + $0x2a0] sm:$0xff]
      %v1417 = vld [vmem:[%s11 + $0x2a8] sm:$0xff]
      %v1418 = vld [vmem:[%s11 + $0x2b0] sm:$0xff]
      %v1419 = vld [vmem:[%s11 + $0x2b8] sm:$0xff]
      %v1420 = vld [vmem:[%s11 + $0x2c0] sm:$0xff]
      %v1421 = vld [vmem:[%s11 + $0x2c8] sm:$0xff]
      %v1422 = vld [vmem:[%s11 + $0x2d0] sm:$0xff]
      %v1423 = vld [vmem:[%s11 + $0x2d8] sm:$0xff]
      %v1424 = vld [vmem:[%s11 + $0x2e0] sm:$0xff]
      %v1425 = vld [vmem:[%s11 + $0x2e8] sm:$0xff]
      %v1426 = vld [vmem:[%s11 + $0x2f0] sm:$0xff]
      %v1427 = vld [vmem:[%s11 + $0x2f8] sm:$0xff]
      %v1428 = vld [vmem:[%s11 + $0x300] sm:$0xff]
      %v1429 = vld [vmem:[%s11 + $0x308] sm:$0xff]
      %v1430 = vld [vmem:[%s11 + $0x310] sm:$0xff]
      %v1431 = vld [vmem:[%s11 + $0x318] sm:$0xff]
      %v1432 = vld [vmem:[%s11 + $0x320] sm:$0xff]
      %v1433 = vld [vmem:[%s11 + $0x328] sm:$0xff]
      %v1434 = vld [vmem:[%s11 + $0x330] sm:$0xff]
      %v1435 = vld [vmem:[%s11 + $0x338] sm:$0xff]
      %v1436 = vld [vmem:[%s11 + $0x340] sm:$0xff]
      %v1437 = vld [vmem:[%s11 + $0x348] sm:$0xff]
      %v1438 = vld [vmem:[%s11 + $0x350] sm:$0xff]
      %v1439 = vld [vmem:[%s11 + $0x358] sm:$0xff]
      %v1440 = vld [vmem:[%s12] sm:$0x7]
      %v1442 = vperm.slane %v1440, 0
      %v1443 = vperm.slane %v1440, 1
      %v1444 = vperm.slane %v1440, 2
      %v1449 = vsel %vm487, %v1328, 0
      %v1452 = vsel %vm487, %v1331, 0
      %1454 = vmatpush.msra.mxu0 %v1377
      %1455 = vmatpush.msra.mxu0 %v1374
      %1456 = vmatpush.msra.mxu0 %v1371
      %1457 = vmatpush.msra.mxu0 %v1368
      %1458 = vmatpush.msra.mxu0 %v1365
      %1459 = vmatpush.msra.mxu0 %v1362
      %1460 = vmatpush.msra.mxu0 %v1359
      %1461 = vmatpush.msra.mxu0 %v1356
      %1462 = vmatpush.msra.mxu0 %v1353
      %1463 = vmatpush.msra.mxu0 %v1350
      %1464 = vmatpush.msra.mxu0 %v1347
      %1465 = vmatpush.msra.mxu0 %v1344
      %1466 = vmatpush.msra.mxu0 %v1341
      %1467 = vmatpush.msra.mxu0 %v1338
      %1468 = vmatpush.msra.mxu0 %v1335
      %1469 = vmatpush.msra.mxu0 %v1332
      %1470 = vmatmul.f32.gmra.mxu0 %v1326
      %v1471 = vpop.f32.mrf.mxu0
      %v1472 = vadd.f32 %v1442, %v1471
      %1473 = vmatmul.f32.gmra.mxu0 %v1329
      %v1474 = vpop.f32.mrf.mxu0
      %v1475 = vadd.f32 %v1442, %v1474
      %1476 = vdwg.mxu0
      %1477 = vmatpush.msra.mxu0 %v1425
      %1478 = vmatpush.msra.mxu0 %v1422
      %1479 = vmatpush.msra.mxu0 %v1419
      %1480 = vmatpush.msra.mxu0 %v1416
      %1481 = vmatpush.msra.mxu0 %v1413
      %1482 = vmatpush.msra.mxu0 %v1410
      %1483 = vmatpush.msra.mxu0 %v1407
      %1484 = vmatpush.msra.mxu0 %v1404
      %1485 = vmatpush.msra.mxu0 %v1401
      %1486 = vmatpush.msra.mxu0 %v1398
      %1487 = vmatpush.msra.mxu0 %v1395
      %1488 = vmatpush.msra.mxu0 %v1392
      %1489 = vmatpush.msra.mxu0 %v1389
      %1490 = vmatpush.msra.mxu0 %v1386
      %1491 = vmatpush.msra.mxu0 %v1383
      %1492 = vmatpush.msra.mxu0 %v1380
      %1493 = vmatmul.f32.gmra.mxu0 %v1327
      %v1494 = vpop.f32.mrf.mxu0
      %v1495 = vadd.f32 %v1472, %v1494
      %1496 = vmatmul.f32.gmra.mxu0 %v1330
      %v1497 = vpop.f32.mrf.mxu0
      %v1498 = vadd.f32 %v1475, %v1497
      %1499 = vdwg.mxu0
      %1500 = vmatpush.msra.mxu0 0.0
      %1501 = vmatpush.msra.mxu0 0.0
      %1502 = vmatpush.msra.mxu0 0.0
      %1503 = vmatpush.msra.mxu0 0.0
      %1504 = vmatpush.msra.mxu0 0.0
      %1505 = vmatpush.msra.mxu0 0.0
      %1506 = vmatpush.msra.mxu0 0.0
      %1507 = vmatpush.msra.mxu0 0.0
      %1508 = vmatpush.msra.mxu0 0.0
      %1509 = vmatpush.msra.mxu0 0.0
      %1510 = vmatpush.msra.mxu0 0.0
      %1511 = vmatpush.msra.mxu0 0.0
      %1512 = vmatpush.msra.mxu0 %v1437
      %1513 = vmatpush.msra.mxu0 %v1434
      %1514 = vmatpush.msra.mxu0 %v1431
      %1515 = vmatpush.msra.mxu0 %v1428
      %1516 = vmatmul.f32.gmra.mxu0 %v1449
      %v1517 = vpop.f32.mrf.mxu0
      %v1518 = vadd.f32 %v1495, %v1517
      %1519 = vmatmul.f32.gmra.mxu0 %v1452
      %v1520 = vpop.f32.mrf.mxu0
      %v1521 = vadd.f32 %v1498, %v1520
      %1522 = vdwg.mxu0
      %1523 = vmatpush.msra.mxu0 %v1378
      %1524 = vmatpush.msra.mxu0 %v1375
      %1525 = vmatpush.msra.mxu0 %v1372
      %1526 = vmatpush.msra.mxu0 %v1369
      %1527 = vmatpush.msra.mxu0 %v1366
      %1528 = vmatpush.msra.mxu0 %v1363
      %1529 = vmatpush.msra.mxu0 %v1360
      %1530 = vmatpush.msra.mxu0 %v1357
      %1531 = vmatpush.msra.mxu0 %v1354
      %1532 = vmatpush.msra.mxu0 %v1351
      %1533 = vmatpush.msra.mxu0 %v1348
      %1534 = vmatpush.msra.mxu0 %v1345
      %1535 = vmatpush.msra.mxu0 %v1342
      %1536 = vmatpush.msra.mxu0 %v1339
      %1537 = vmatpush.msra.mxu0 %v1336
      %1538 = vmatpush.msra.mxu0 %v1333
      %1539 = vmatmul.f32.gmra.mxu0 %v1326
      %v1540 = vpop.f32.mrf.mxu0
      %v1541 = vadd.f32 %v1443, %v1540
      %1542 = vmatmul.f32.gmra.mxu0 %v1329
      %v1543 = vpop.f32.mrf.mxu0
      %v1544 = vadd.f32 %v1443, %v1543
      %1545 = vdwg.mxu0
      %1546 = vmatpush.msra.mxu0 %v1426
      %1547 = vmatpush.msra.mxu0 %v1423
      %1548 = vmatpush.msra.mxu0 %v1420
      %1549 = vmatpush.msra.mxu0 %v1417
      %1550 = vmatpush.msra.mxu0 %v1414
      %1551 = vmatpush.msra.mxu0 %v1411
      %1552 = vmatpush.msra.mxu0 %v1408
      %1553 = vmatpush.msra.mxu0 %v1405
      %1554 = vmatpush.msra.mxu0 %v1402
      %1555 = vmatpush.msra.mxu0 %v1399
      %1556 = vmatpush.msra.mxu0 %v1396
      %1557 = vmatpush.msra.mxu0 %v1393
      %1558 = vmatpush.msra.mxu0 %v1390
      %1559 = vmatpush.msra.mxu0 %v1387
      %1560 = vmatpush.msra.mxu0 %v1384
      %1561 = vmatpush.msra.mxu0 %v1381
      %1562 = vmatmul.f32.gmra.mxu0 %v1327
      %v1563 = vpop.f32.mrf.mxu0
      %v1564 = vadd.f32 %v1541, %v1563
      %1565 = vmatmul.f32.gmra.mxu0 %v1330
      %v1566 = vpop.f32.mrf.mxu0
      %v1567 = vadd.f32 %v1544, %v1566
      %1568 = vdwg.mxu0
      %1569 = vmatpush.msra.mxu0 0.0
      %1570 = vmatpush.msra.mxu0 0.0
      %1571 = vmatpush.msra.mxu0 0.0
      %1572 = vmatpush.msra.mxu0 0.0
      %1573 = vmatpush.msra.mxu0 0.0
      %1574 = vmatpush.msra.mxu0 0.0
      %1575 = vmatpush.msra.mxu0 0.0
      %1576 = vmatpush.msra.mxu0 0.0
      %1577 = vmatpush.msra.mxu0 0.0
      %1578 = vmatpush.msra.mxu0 0.0
      %1579 = vmatpush.msra.mxu0 0.0
      %1580 = vmatpush.msra.mxu0 0.0
      %1581 = vmatpush.msra.mxu0 %v1438
      %1582 = vmatpush.msra.mxu0 %v1435
      %1583 = vmatpush.msra.mxu0 %v1432
      %1584 = vmatpush.msra.mxu0 %v1429
      %1585 = vmatmul.f32.gmra.mxu0 %v1449
      %v1586 = vpop.f32.mrf.mxu0
      %v1587 = vadd.f32 %v1564, %v1586
      %1588 = vmatmul.f32.gmra.mxu0 %v1452
      %v1589 = vpop.f32.mrf.mxu0
      %v1590 = vadd.f32 %v1567, %v1589
      %1591 = vdwg.mxu0
      %1592 = vmatpush.msra.mxu0 %v1379
      %1593 = vmatpush.msra.mxu0 %v1376
      %1594 = vmatpush.msra.mxu0 %v1373
      %1595 = vmatpush.msra.mxu0 %v1370
      %1596 = vmatpush.msra.mxu0 %v1367
      %1597 = vmatpush.msra.mxu0 %v1364
      %1598 = vmatpush.msra.mxu0 %v1361
      %1599 = vmatpush.msra.mxu0 %v1358
      %1600 = vmatpush.msra.mxu0 %v1355
      %1601 = vmatpush.msra.mxu0 %v1352
      %1602 = vmatpush.msra.mxu0 %v1349
      %1603 = vmatpush.msra.mxu0 %v1346
      %1604 = vmatpush.msra.mxu0 %v1343
      %1605 = vmatpush.msra.mxu0 %v1340
      %1606 = vmatpush.msra.mxu0 %v1337
      %1607 = vmatpush.msra.mxu0 %v1334
      %1608 = vmatmul.f32.gmra.mxu0 %v1326
      %v1609 = vpop.f32.mrf.mxu0
      %v1610 = vadd.f32 %v1444, %v1609
      %1611 = vmatmul.f32.gmra.mxu0 %v1329
      %v1612 = vpop.f32.mrf.mxu0
      %v1613 = vadd.f32 %v1444, %v1612
      %1614 = vdwg.mxu0
      %1615 = vmatpush.msra.mxu0 %v1427
      %1616 = vmatpush.msra.mxu0 %v1424
      %1617 = vmatpush.msra.mxu0 %v1421
      %1618 = vmatpush.msra.mxu0 %v1418
      %1619 = vmatpush.msra.mxu0 %v1415
      %1620 = vmatpush.msra.mxu0 %v1412
      %1621 = vmatpush.msra.mxu0 %v1409
      %1622 = vmatpush.msra.mxu0 %v1406
      %1623 = vmatpush.msra.mxu0 %v1403
      %1624 = vmatpush.msra.mxu0 %v1400
      %1625 = vmatpush.msra.mxu0 %v1397
      %1626 = vmatpush.msra.mxu0 %v1394
      %1627 = vmatpush.msra.mxu0 %v1391
      %1628 = vmatpush.msra.mxu0 %v1388
      %1629 = vmatpush.msra.mxu0 %v1385
      %1630 = vmatpush.msra.mxu0 %v1382
      %1631 = vmatmul.f32.gmra.mxu0 %v1327
      %v1632 = vpop.f32.mrf.mxu0
      %v1633 = vadd.f32 %v1610, %v1632
      %1634 = vmatmul.f32.gmra.mxu0 %v1330
      %v1635 = vpop.f32.mrf.mxu0
      %v1636 = vadd.f32 %v1613, %v1635
      %1637 = vdwg.mxu0
      %1638 = vmatpush.msra.mxu0 0.0
      %1639 = vmatpush.msra.mxu0 0.0
      %1640 = vmatpush.msra.mxu0 0.0
      %1641 = vmatpush.msra.mxu0 0.0
      %1642 = vmatpush.msra.mxu0 0.0
      %1643 = vmatpush.msra.mxu0 0.0
      %1644 = vmatpush.msra.mxu0 0.0
      %1645 = vmatpush.msra.mxu0 0.0
      %1646 = vmatpush.msra.mxu0 0.0
      %1647 = vmatpush.msra.mxu0 0.0
      %1648 = vmatpush.msra.mxu0 0.0
      %1649 = vmatpush.msra.mxu0 0.0
      %1650 = vmatpush.msra.mxu0 %v1439
      %1651 = vmatpush.msra.mxu0 %v1436
      %1652 = vmatpush.msra.mxu0 %v1433
      %1653 = vmatpush.msra.mxu0 %v1430
      %1654 = vmatmul.f32.gmra.mxu0 %v1449
      %v1655 = vpop.f32.mrf.mxu0
      %v1656 = vadd.f32 %v1633, %v1655
      %1657 = vmatmul.f32.gmra.mxu0 %v1452
      %v1658 = vpop.f32.mrf.mxu0
      %v1659 = vadd.f32 %v1636, %v1658
      %1660 = vdwg.mxu0
      %1661 = vst [vmem:[%s440] sm:$0xff] %v1518
      %1662 = vst [vmem:[%s440 + $0x8] sm:$0xff] %v1587
      %1663 = vst.msk [vmem:[%s440 + $0x10] sm:$0xff] %vm487, %v1656
      %1664 = vst [vmem:[%s440 + $0x18] sm:$0xff] %v1521
      %1665 = vst [vmem:[%s440 + $0x20] sm:$0xff] %v1590
      %1666 = vst.msk [vmem:[%s440 + $0x28] sm:$0xff] %vm487, %v1659
      %p1667 = scmp.lt.s32.totalorder %s24, 1
      %s1668 = scalar_select %p1667, %s24, 1
      %s1669 = smul.addr %s1668, 6
      %s1670 = smul.addr %s1669, 8
      %s1671 = scalar_lea.vmem %s13, %s1670
      // Predicated region
      $region73: #{tpmfb_forward.1} parent=71 // pred_check
        %p1672 = pneg %p320
      $region74: #{tpmfb_forward.1} parent=71 // pred_check_branch
        %1674 = sbr.rel (%p1672) target = $region76
      $region75: #{tpmfb_forward.1} parent=71 // pred_region
        _
      $region76: #{tpmfb_forward.1} parent=71 // pred_fallthru
        _
    $region72: #{tpmfb_forward.1} parent=5 // pred_fallthru
      _
    %p1675 = scmp.le.s32.totalorder 2, %s19
    // Predicated region
    $region77: #{tpmfb_forward.1} parent=5 // pred_check
      %p1676 = pneg %p1675
    $region78: #{tpmfb_forward.1} parent=5 // pred_check_branch
      %1678 = sbr.rel (%p1676) target = $region80
    $region79: #{tpmfb_forward.1} parent=5 // pred_region
      %s1679 = ssub.s32 %s19, 2
      // Predicated region
      $region81: #{tpmfb_forward.1} parent=79 // pred_check
        %p1680 = pneg %p326
      $region82: #{tpmfb_forward.1} parent=79 // pred_check_branch
        %1682 = sbr.rel (%p1680) target = $region84
      $region83: #{tpmfb_forward.1} parent=79 // pred_region
        %p1683 = scmp.lt.s32.totalorder %s25, 1
        %s1684 = scalar_select %p1683, %s25, 1
        %s1685 = smul.addr %s1684, 6
        %s1686 = smul.addr %s1685, 8
        %s1687 = scalar_lea.vmem %s13, %s1686
      $region84: #{tpmfb_forward.1} parent=79 // pred_fallthru
        _
    $region80: #{tpmfb_forward.1} parent=5 // pred_fallthru
      _
  $region6: #{tpmfb_forward.1} parent=0 // loop_footer
    %s23 = sadd.s32 1, %s19
  $region7: #{tpmfb_forward.1} parent=0 // loop_footer_branch
    %18 = sbr.rel target = $region3
  $region8: #{tpmfb_forward.1} parent=0 // loop_exit
    _

</llo_original>
